<compile_context>
chip_gen: v7x
topology: tpu7x:2x2x1
jax: 0.10.0
libtpu: 0.0.40
codegen_flags: <defaults>
</compile_context>

<pallas_src>
import functools

import jax
import jax.numpy as jnp
import numpy as np
from jax.experimental import pallas as pl
from jax.experimental.pallas import tpu as pltpu

_LANE = 128
_SUB = 16          # bf16 packs two rows per sublane -> batch tiles % 16 == 0


def _round_up(n, m):
    return (n + m - 1) // m * m


def _vmem_capacity_bytes():
    """Generation-aware VMEM capacity (128 MiB v5e/v6e, 64 MiB/TC v7x)."""
    try:
        cap = int(getattr(pltpu.get_tpu_info(), "vmem_capacity_bytes", 0))
        if cap > 0:
            return cap
    except Exception:
        pass
    try:
        kind = jax.devices()[0].device_kind.lower()
        if "v7" in kind:
            return 64 * 1024 * 1024
    except Exception:
        pass
    return 128 * 1024 * 1024


def _pad2(a, rows, cols):
    return jnp.pad(a, ((0, rows - a.shape[0]), (0, cols - a.shape[1])))


def _feedforward_kernel(num_layers, *refs):
    """refs = (x, W0, W_1..W_{L-1}, W_out, alphas[L,H], hid_bias[L,H],
               b_out[1,Nout], o_ref).

    Weights arrive as bf16; x is cast to bf16 in-kernel; accumulation, bias
    add and PReLU stay in float32.
    """
    x_ref = refs[0]
    w_refs = refs[1:2 + num_layers]          # num_layers + 1 weight matrices
    alphas_ref = refs[2 + num_layers]        # [L, H]  f32
    hbias_ref = refs[3 + num_layers]         # [L, H]  f32
    bout_ref = refs[4 + num_layers]          # [1, Nout] f32
    o_ref = refs[5 + num_layers]

    w0 = w_refs[0][...]
    h = jnp.dot(x_ref[...].astype(w0.dtype), w0,
                preferred_element_type=jnp.float32) + hbias_ref[0:1, :]
    # TODO(synk): Dropout layers are identity here (inference / eval mode).

    for l in range(num_layers - 1):
        alpha = alphas_ref[l:l + 1, :]
        h = jnp.where(h > 0, h, alpha * h)                       # PReLU (f32)
        w = w_refs[1 + l][...]
        h = (jnp.dot(h.astype(w.dtype), w,
                     preferred_element_type=jnp.float32)
             + hbias_ref[l + 1:l + 2, :])                        # MXU

    alpha = alphas_ref[num_layers - 1:num_layers, :]
    h = jnp.where(h > 0, h, alpha * h)
    w_out = w_refs[num_layers][...]
    out = jnp.dot(h.astype(w_out.dtype), w_out,
                  preferred_element_type=jnp.float32) + bout_ref[...]
    o_ref[...] = out.astype(o_ref.dtype)


def _pack_params(params, num_layers, din_p, h_p, nout_p, w_dtype):
    """Lane-pad every parameter; weights -> bf16; stack alphas / hidden
    biases into single [num_layers, H] arrays."""
    weights = [_pad2(params[0], din_p, h_p).astype(w_dtype)]               # W0
    hid_biases = [_pad2(params[1].reshape(1, -1), 1, h_p).astype(jnp.float32)]
    alphas = []
    idx = 2
    for _ in range(num_layers - 1):
        alphas.append(_pad2(params[idx].reshape(1, -1), 1, h_p)
                      .astype(jnp.float32))
        weights.append(_pad2(params[idx + 1], h_p, h_p).astype(w_dtype))
        hid_biases.append(_pad2(params[idx + 2].reshape(1, -1), 1, h_p)
                          .astype(jnp.float32))
        idx += 3
    alphas.append(_pad2(params[idx].reshape(1, -1), 1, h_p).astype(jnp.float32))
    weights.append(_pad2(params[idx + 1], h_p, nout_p).astype(w_dtype))    # W_out
    b_out = _pad2(params[idx + 2].reshape(1, -1), 1, nout_p).astype(jnp.float32)
    return (weights,
            jnp.concatenate(alphas, axis=0),       # [L, h_p]
            jnp.concatenate(hid_biases, axis=0),   # [L, h_p]
            b_out)                                  # [1, nout_p]


def feedforward_pallas(x, params, num_layers, *, batch_tile=None,
                       weight_dtype=jnp.bfloat16, out_dtype=None,
                       interpret=False):
    """x: [B, n_inputs]; params: flat list in the PyTorch module's order."""
    B, din = x.shape
    hidden = params[0].shape[1]
    n_outputs = params[-1].shape[-1]
    out_dtype = x.dtype if out_dtype is None else out_dtype

    din_p = _round_up(din, _LANE)
    h_p = _round_up(hidden, _LANE)
    nout_p = _round_up(n_outputs, _LANE)

    weights, alphas, hid_biases, b_out = _pack_params(
        params, num_layers, din_p, h_p, nout_p, weight_dtype)
    flat_params = list(weights) + [alphas, hid_biases, b_out]
    param_bytes = int(sum(p.size * p.dtype.itemsize for p in flat_params))

    x_itemsize = int(np.dtype(x.dtype).itemsize)
    o_itemsize = int(np.dtype(out_dtype).itemsize)

    cap = _vmem_capacity_bytes()
    budget = int(cap * 0.78)        # headroom for compiler-internal scratch

    def vmem_bytes(bt, pmult):
        act_in = 2 * bt * din_p * x_itemsize       # double-buffered x blocks
        act_out = 2 * bt * nout_p * o_itemsize     # double-buffered out blocks
        work = 8 * bt * h_p * 4                    # live f32/bf16 hidden tiles
        return pmult * param_bytes + act_in + act_out + work

    def choose_tile(pmult):
        cap_bt = _round_up(B, _SUB)
        if cap_bt >= 2 * _LANE:
            # Keep >= 2 grid steps so both v7x TensorCores get work; the extra
            # ~0.35 us step is negligible on single-TC v5e/v6e.
            cap_bt = max(_LANE, (cap_bt // 2) // _LANE * _LANE)
        if batch_tile is None:
            bt = cap_bt                                    # grow toward budget
        else:
            bt = min(_round_up(batch_tile, _SUB), cap_bt)
        bt = max(_SUB, bt)
        # TODO(synk): if the resident weight set alone approaches `budget`
        # (hidden >~ 3K bf16 with L=3 on v7x's 64 MiB VMEM), stream weights
        # layer-by-layer / K-tile with pltpu.emit_pipeline instead of
        # shrinking the batch tile.
        while bt > _SUB and vmem_bytes(bt, pmult) > budget:
            bt = max(_SUB, (bt // 2) // _SUB * _SUB)
        return bt

    def run(pmult, single_buffer):
        bt = choose_tile(pmult)
        b_pad = _round_up(B, bt)
        n_grid = b_pad // bt

        # Avoid the standalone wrapper pad/cast pass when already aligned;
        # the bf16 cast of x always happens inside the kernel.
        if b_pad == B and din_p == din:
            x_in = x
        else:
            x_in = jnp.pad(x, ((0, b_pad - B), (0, din_p - din)))

        vmem_limit = int(min(cap * 9 // 10,
                             max(32 * 1024 * 1024,
                                 vmem_bytes(bt, pmult) * 5 // 4)))

        flops = 2 * b_pad * (din_p * h_p + (num_layers - 1) * h_p * h_p
                             + h_p * nout_p)
        bytes_accessed = (param_bytes + b_pad * din_p * x_itemsize
                          + b_pad * nout_p * o_itemsize)
        cost = pl.CostEstimate(flops=int(flops), transcendentals=0,
                               bytes_accessed=int(bytes_accessed))

        def param_spec(shape):
            imap = lambda i, _nd=len(shape): (0,) * _nd
            if single_buffer:
                # Constant index_map -> DMA'd once; single-buffer to halve
                # the resident parameter VMEM.
                return pl.BlockSpec(shape, imap, pipeline_mode=pl.Buffered(1))
            return pl.BlockSpec(shape, imap)

        in_specs = [pl.BlockSpec((bt, din_p), lambda i: (i, 0))]
        in_specs += [param_spec(p.shape) for p in flat_params]
        out_spec = pl.BlockSpec((bt, nout_p), lambda i: (i, 0))

        call = pl.pallas_call(
            functools.partial(_feedforward_kernel, num_layers),
            out_shape=jax.ShapeDtypeStruct((b_pad, nout_p), out_dtype),
            grid_spec=pltpu.PrefetchScalarGridSpec(
                num_scalar_prefetch=0,
                grid=(n_grid,),
                in_specs=in_specs,
                out_specs=out_spec,
            ),
            compiler_params=pltpu.CompilerParams(
                dimension_semantics=("parallel",),
                vmem_limit_bytes=vmem_limit),
            cost_estimate=cost,
            interpret=interpret,
        )
        return call(x_in, *flat_params)[:B, :n_outputs]

    if hasattr(pl, "Buffered"):
        try:
            return run(1, True)
        except (TypeError, ValueError, NotImplementedError,
                pltpu.LoweringException):
            # Builds that reject Buffered(1) parameter blocks: fall back to
            # double-buffered params with a re-derived tile / VMEM limit.
            pass
    return run(2, False)


# ---------------------------------------------------------------------------
# Deterministic parameter construction (mirrors the PyTorch __init__ shapes).
# ---------------------------------------------------------------------------
def init_params(key, n_inputs, hidden_size, num_layers, n_outputs,
                dtype=jnp.float32):
    """Kaiming-normal (a=0.2, fan_in, leaky_relu) weights, uniform biases,
    PReLU alphas at 0.25 (PyTorch default). Weights stored as [in, out]."""

    def kaiming(k, fan_in, fan_out):
        gain = (2.0 / (1.0 + 0.2 ** 2)) ** 0.5
        std = gain / (fan_in ** 0.5)
        return (std * jax.random.normal(k, (fan_in, fan_out))).astype(dtype)

    def bias(k, fan_in, fan_out):
        bound = 1.0 / (fan_in ** 0.5)
        return jax.random.uniform(k, (1, fan_out), minval=-bound,
                                  maxval=bound).astype(dtype)

    params = []
    keys = jax.random.split(key, 2 * (num_layers + 1))
    ki = 0

    params.append(kaiming(keys[ki], n_inputs, hidden_size)); ki += 1
    params.append(bias(keys[ki], n_inputs, hidden_size)); ki += 1

    for _ in range(num_layers - 1):
        params.append(jnp.full((1, hidden_size), 0.25, dtype=dtype))  # PReLU
        params.append(kaiming(keys[ki], hidden_size, hidden_size)); ki += 1
        params.append(bias(keys[ki], hidden_size, hidden_size)); ki += 1

    params.append(jnp.full((1, hidden_size), 0.25, dtype=dtype))
    params.append(kaiming(keys[ki], hidden_size, n_outputs)); ki += 1
    params.append(bias(keys[ki], hidden_size, n_outputs)); ki += 1

    return params


def feedforward_ref(x, params, num_layers, *, simulate_bf16=True):
    """Pure-JAX reference; optionally simulates the kernel's bf16 matmul
    operands (f32 accumulation) for tight numerical comparison."""

    def mm(a, w):
        if simulate_bf16:
            a = a.astype(jnp.bfloat16)
            w = w.astype(jnp.bfloat16)
        return jnp.dot(a, w, preferred_element_type=jnp.float32)

    h = mm(x, params[0]) + params[1]
    idx = 2
    for _ in range(num_layers - 1):
        a, w, b = params[idx], params[idx + 1], params[idx + 2]
        idx += 3
        h = jnp.where(h > 0, h, a * h)
        h = mm(h, w) + b
    a, w, b = params[idx], params[idx + 1], params[idx + 2]
    h = jnp.where(h > 0, h, a * h)
    return (mm(h, w) + b).astype(x.dtype)


if __name__ == "__main__":
    n_inputs, hidden_size, num_layers, n_outputs = 32, 64, 3, 16
    batch = 256   # auto tile -> 128-row tiles, 2 grid steps (both v7x TCs busy)

    key = jax.random.PRNGKey(0)
    kx, kp = jax.random.split(key)
    x = jax.random.normal(kx, (batch, n_inputs), dtype=jnp.float32)
    params = init_params(kp, n_inputs, hidden_size, num_layers, n_outputs)

    out = feedforward_pallas(x, params, num_layers)
    out = jax.block_until_ready(out)

    ref = feedforward_ref(x, params, num_layers, simulate_bf16=True)
    assert out.shape == (batch, n_outputs)
    max_err = float(jnp.max(jnp.abs(out - ref)))
    assert jnp.allclose(out, ref, atol=1e-2, rtol=1e-2), (
        f"mismatch vs reference, max abs err = {max_err}")

    print("KERNEL_OK")
</pallas_src>

<mosaic_0001>
module attributes {stable_mosaic.version = 11 : i64} {
  func.func @_feedforward_kernel(%arg0: i32, %arg1: memref<128x128xf32, #tpu.memory_space<vmem>>, %arg2: memref<128x128xbf16, #tpu.memory_space<vmem>>, %arg3: memref<128x128xbf16, #tpu.memory_space<vmem>>, %arg4: memref<128x128xbf16, #tpu.memory_space<vmem>>, %arg5: memref<128x128xbf16, #tpu.memory_space<vmem>>, %arg6: memref<3x128xf32, #tpu.memory_space<vmem>>, %arg7: memref<3x128xf32, #tpu.memory_space<vmem>>, %arg8: memref<1x128xf32, #tpu.memory_space<vmem>>, %arg9: memref<128x128xf32, #tpu.memory_space<vmem>>) attributes {dimension_semantics = [#tpu.dimension_semantics<parallel>], iteration_bounds = array<i64: 2>, scalar_prefetch = 0 : i64, scratch_operands = 0 : i64, tpu.core_type = #tpu.core_type<tc>, window_params = [{transform_indices = @transform_0, window_bounds = array<i64: 128, 128>}, {pipeline_mode = #tpu.pipeline_mode<synchronous>, transform_indices = @transform_1, window_bounds = array<i64: 128, 128>}, {pipeline_mode = #tpu.pipeline_mode<synchronous>, transform_indices = @transform_2, window_bounds = array<i64: 128, 128>}, {pipeline_mode = #tpu.pipeline_mode<synchronous>, transform_indices = @transform_3, window_bounds = array<i64: 128, 128>}, {pipeline_mode = #tpu.pipeline_mode<synchronous>, transform_indices = @transform_4, window_bounds = array<i64: 128, 128>}, {pipeline_mode = #tpu.pipeline_mode<synchronous>, transform_indices = @transform_5, window_bounds = array<i64: 3, 128>}, {pipeline_mode = #tpu.pipeline_mode<synchronous>, transform_indices = @transform_6, window_bounds = array<i64: 3, 128>}, {pipeline_mode = #tpu.pipeline_mode<synchronous>, transform_indices = @transform_7, window_bounds = array<i64: 1, 128>}, {transform_indices = @transform_8, window_bounds = array<i64: 128, 128>}]} {
    %c0 = arith.constant 0 : index
    %c0_0 = arith.constant 0 : index
    %0 = vector.load %arg2[%c0, %c0_0] : memref<128x128xbf16, #tpu.memory_space<vmem>>, vector<128x128xbf16>
    %c0_1 = arith.constant 0 : index
    %c0_2 = arith.constant 0 : index
    %1 = vector.load %arg1[%c0_1, %c0_2] : memref<128x128xf32, #tpu.memory_space<vmem>>, vector<128x128xf32>
    %2 = arith.truncf %1 : vector<128x128xf32> to vector<128x128xbf16>
    %cst = arith.constant dense<0.000000e+00> : vector<128x128xf32>
    %3 = tpu.matmul %2, %0, %cst {dimension_numbers = #tpu.dot_dimension_numbers<[1], [0], [0], [1], [0, 0, 1, 1], [], []>} : vector<128x128xbf16>, vector<128x128xbf16>, vector<128x128xf32> -> vector<128x128xf32>
    %c0_3 = arith.constant 0 : index
    %c0_4 = arith.constant 0 : index
    %4 = vector.load %arg7[%c0_3, %c0_4] : memref<3x128xf32, #tpu.memory_space<vmem>>, vector<1x128xf32>
    %5 = vector.broadcast %4 : vector<1x128xf32> to vector<128x128xf32>
    %6 = arith.addf %3, %5 : vector<128x128xf32>
    %c0_5 = arith.constant 0 : index
    %c0_6 = arith.constant 0 : index
    %7 = vector.load %arg6[%c0_5, %c0_6] : memref<3x128xf32, #tpu.memory_space<vmem>>, vector<1x128xf32>
    %cst_7 = arith.constant 0.000000e+00 : f32
    %8 = vector.broadcast %cst_7 : f32 to vector<128x128xf32>
    %9 = arith.cmpf ogt, %6, %8 : vector<128x128xf32>
    %10 = vector.broadcast %7 : vector<1x128xf32> to vector<128x128xf32>
    %11 = arith.mulf %10, %6 : vector<128x128xf32>
    %12 = arith.select %9, %6, %11 : vector<128x128xi1>, vector<128x128xf32>
    %c0_8 = arith.constant 0 : index
    %c0_9 = arith.constant 0 : index
    %13 = vector.load %arg3[%c0_8, %c0_9] : memref<128x128xbf16, #tpu.memory_space<vmem>>, vector<128x128xbf16>
    %14 = arith.truncf %12 : vector<128x128xf32> to vector<128x128xbf16>
    %cst_10 = arith.constant dense<0.000000e+00> : vector<128x128xf32>
    %15 = tpu.matmul %14, %13, %cst_10 {dimension_numbers = #tpu.dot_dimension_numbers<[1], [0], [0], [1], [0, 0, 1, 1], [], []>} : vector<128x128xbf16>, vector<128x128xbf16>, vector<128x128xf32> -> vector<128x128xf32>
    %c1 = arith.constant 1 : index
    %c0_11 = arith.constant 0 : index
    %16 = vector.load %arg7[%c1, %c0_11] : memref<3x128xf32, #tpu.memory_space<vmem>>, vector<1x128xf32>
    %17 = vector.broadcast %16 : vector<1x128xf32> to vector<128x128xf32>
    %18 = arith.addf %15, %17 : vector<128x128xf32>
    %c1_12 = arith.constant 1 : index
    %c0_13 = arith.constant 0 : index
    %19 = vector.load %arg6[%c1_12, %c0_13] : memref<3x128xf32, #tpu.memory_space<vmem>>, vector<1x128xf32>
    %cst_14 = arith.constant 0.000000e+00 : f32
    %20 = vector.broadcast %cst_14 : f32 to vector<128x128xf32>
    %21 = arith.cmpf ogt, %18, %20 : vector<128x128xf32>
    %22 = vector.broadcast %19 : vector<1x128xf32> to vector<128x128xf32>
    %23 = arith.mulf %22, %18 : vector<128x128xf32>
    %24 = arith.select %21, %18, %23 : vector<128x128xi1>, vector<128x128xf32>
    %c0_15 = arith.constant 0 : index
    %c0_16 = arith.constant 0 : index
    %25 = vector.load %arg4[%c0_15, %c0_16] : memref<128x128xbf16, #tpu.memory_space<vmem>>, vector<128x128xbf16>
    %26 = arith.truncf %24 : vector<128x128xf32> to vector<128x128xbf16>
    %cst_17 = arith.constant dense<0.000000e+00> : vector<128x128xf32>
    %27 = tpu.matmul %26, %25, %cst_17 {dimension_numbers = #tpu.dot_dimension_numbers<[1], [0], [0], [1], [0, 0, 1, 1], [], []>} : vector<128x128xbf16>, vector<128x128xbf16>, vector<128x128xf32> -> vector<128x128xf32>
    %c2 = arith.constant 2 : index
    %c0_18 = arith.constant 0 : index
    %28 = vector.load %arg7[%c2, %c0_18] : memref<3x128xf32, #tpu.memory_space<vmem>>, vector<1x128xf32>
    %29 = vector.broadcast %28 : vector<1x128xf32> to vector<128x128xf32>
    %30 = arith.addf %27, %29 : vector<128x128xf32>
    %c2_19 = arith.constant 2 : index
    %c0_20 = arith.constant 0 : index
    %31 = vector.load %arg6[%c2_19, %c0_20] : memref<3x128xf32, #tpu.memory_space<vmem>>, vector<1x128xf32>
    %cst_21 = arith.constant 0.000000e+00 : f32
    %32 = vector.broadcast %cst_21 : f32 to vector<128x128xf32>
    %33 = arith.cmpf ogt, %30, %32 : vector<128x128xf32>
    %34 = vector.broadcast %31 : vector<1x128xf32> to vector<128x128xf32>
    %35 = arith.mulf %34, %30 : vector<128x128xf32>
    %36 = arith.select %33, %30, %35 : vector<128x128xi1>, vector<128x128xf32>
    %c0_22 = arith.constant 0 : index
    %c0_23 = arith.constant 0 : index
    %37 = vector.load %arg5[%c0_22, %c0_23] : memref<128x128xbf16, #tpu.memory_space<vmem>>, vector<128x128xbf16>
    %38 = arith.truncf %36 : vector<128x128xf32> to vector<128x128xbf16>
    %cst_24 = arith.constant dense<0.000000e+00> : vector<128x128xf32>
    %39 = tpu.matmul %38, %37, %cst_24 {dimension_numbers = #tpu.dot_dimension_numbers<[1], [0], [0], [1], [0, 0, 1, 1], [], []>} : vector<128x128xbf16>, vector<128x128xbf16>, vector<128x128xf32> -> vector<128x128xf32>
    %c0_25 = arith.constant 0 : index
    %c0_26 = arith.constant 0 : index
    %40 = vector.load %arg8[%c0_25, %c0_26] : memref<1x128xf32, #tpu.memory_space<vmem>>, vector<1x128xf32>
    %41 = vector.broadcast %40 : vector<1x128xf32> to vector<128x128xf32>
    %42 = arith.addf %39, %41 : vector<128x128xf32>
    %c0_27 = arith.constant 0 : index
    %c0_28 = arith.constant 0 : index
    %43 = vector.load %arg9[%c0_27, %c0_28] : memref<128x128xf32, #tpu.memory_space<vmem>>, vector<128x128xf32>
    tpu.vector_store %arg9[%c0_27, %c0_28], %42 {strides = array<i32>} : memref<128x128xf32, #tpu.memory_space<vmem>>, vector<128x128xf32>,
    return
  }
  func.func @transform_0(%arg0: i32) -> (i32, i32) {
    %c0_i32 = arith.constant 0 : i32
    %c0_i32_0 = arith.constant 0 : i32
    return %arg0, %c0_i32 : i32, i32
  }
  func.func @transform_1(%arg0: i32) -> (i32, i32) {
    %c0_i32 = arith.constant 0 : i32
    %c0_i32_0 = arith.constant 0 : i32
    %c0_i32_1 = arith.constant 0 : i32
    return %c0_i32, %c0_i32_0 : i32, i32
  }
  func.func @transform_2(%arg0: i32) -> (i32, i32) {
    %c0_i32 = arith.constant 0 : i32
    %c0_i32_0 = arith.constant 0 : i32
    %c0_i32_1 = arith.constant 0 : i32
    return %c0_i32, %c0_i32_0 : i32, i32
  }
  func.func @transform_3(%arg0: i32) -> (i32, i32) {
    %c0_i32 = arith.constant 0 : i32
    %c0_i32_0 = arith.constant 0 : i32
    %c0_i32_1 = arith.constant 0 : i32
    return %c0_i32, %c0_i32_0 : i32, i32
  }
  func.func @transform_4(%arg0: i32) -> (i32, i32) {
    %c0_i32 = arith.constant 0 : i32
    %c0_i32_0 = arith.constant 0 : i32
    %c0_i32_1 = arith.constant 0 : i32
    return %c0_i32, %c0_i32_0 : i32, i32
  }
  func.func @transform_5(%arg0: i32) -> (i32, i32) {
    %c0_i32 = arith.constant 0 : i32
    %c0_i32_0 = arith.constant 0 : i32
    %c0_i32_1 = arith.constant 0 : i32
    return %c0_i32, %c0_i32_0 : i32, i32
  }
  func.func @transform_6(%arg0: i32) -> (i32, i32) {
    %c0_i32 = arith.constant 0 : i32
    %c0_i32_0 = arith.constant 0 : i32
    %c0_i32_1 = arith.constant 0 : i32
    return %c0_i32, %c0_i32_0 : i32, i32
  }
  func.func @transform_7(%arg0: i32) -> (i32, i32) {
    %c0_i32 = arith.constant 0 : i32
    %c0_i32_0 = arith.constant 0 : i32
    %c0_i32_1 = arith.constant 0 : i32
    return %c0_i32, %c0_i32_0 : i32, i32
  }
  func.func @transform_8(%arg0: i32) -> (i32, i32) {
    %c0_i32 = arith.constant 0 : i32
    %c0_i32_0 = arith.constant 0 : i32
    return %arg0, %c0_i32 : i32, i32
  }
}

</mosaic_0001>

<llo_original>
// kernel: tpu_custom_call.1
$region0: #{tpu_custom_call.1}
  #allocation0 [shape = 'u32[]', space=smem, size = 0x4, offset = 0x4, fixed_abs, tag = 'smem constant byte address 0x4 - core index']
  #allocation1 [shape = 'u32[144,128]{1,0:T(1,128)}', space=vmem, size = 0x12000, scoped, tag = 'internal scratch']
  %s0 = inlined_call_operand.hbm [shape: f32[256,128], index: 0, kind: input, shape index: {}]
  %s1 = inlined_call_operand.hbm [shape: bf16[128,128], index: 1, kind: input, shape index: {}]
  %s2 = inlined_call_operand.hbm [shape: bf16[128,128], index: 2, kind: input, shape index: {}]
  %s3 = inlined_call_operand.hbm [shape: bf16[128,128], index: 3, kind: input, shape index: {}]
  %s4 = inlined_call_operand.hbm [shape: bf16[128,128], index: 4, kind: input, shape index: {}]
  %s5 = inlined_call_operand.vmem [shape: f32[3,128], index: 5, kind: input, shape index: {}]
  %s6 = inlined_call_operand.vmem [shape: f32[3,128], index: 6, kind: input, shape index: {}]
  %s7 = inlined_call_operand.vmem [shape: f32[1,128], index: 7, kind: input, shape index: {}]
  %s8 = inlined_call_operand.hbm [shape: f32[256,128], index: 8, kind: output, shape index: {}]
  %s9 = sld [smem:[#allocation0]]
  $region85: #{tpu_custom_call.1} parent=0
    _
  %s11 = ssub.s32 1, %s9
  %s12 = scalar_select 0, %s11, %s9
  $region1: #{tpu_custom_call.1} parent=0
    #allocation2 [shape = 'u8[131072]{0}', space=vmem, size = 0x20000, scoped, tag = 'input window, operand 0']
    #allocation3 [shape = 's32[2]{0}', space=sflag, size = 0x8, scoped, tag = 'scoped memory for tpu_custom_call.1']
    #allocation4 [shape = 's32[2]{0}', space=sflag, size = 0x8, scoped, tag = 'scoped memory for tpu_custom_call.1']
    #allocation5 [shape = 'u8[32768]{0}', space=vmem, size = 0x8000, scoped, tag = 'input window, operand 1, single buffered']
    #allocation6 [shape = 's32[1]{0}', space=sflag, size = 0x4, scoped, tag = 'scoped memory for tpu_custom_call.1']
    #allocation7 [shape = 'u8[32768]{0}', space=vmem, size = 0x8000, scoped, tag = 'input window, operand 2, single buffered']
    #allocation8 [shape = 'u8[32768]{0}', space=vmem, size = 0x8000, scoped, tag = 'input window, operand 3, single buffered']
    #allocation9 [shape = 's32[1]{0}', space=sflag, size = 0x4, scoped, tag = 'scoped memory for tpu_custom_call.1']
    #allocation10 [shape = 'u8[32768]{0}', space=vmem, size = 0x8000, scoped, tag = 'input window, operand 4, single buffered']
    #allocation11 [shape = 'u8[131072]{0}', space=vmem, size = 0x20000, scoped, tag = 'output window, operand 0']
    %13 = vsyncpa [#allocation3], 0
    %s14 = scalar_lea.sflag [#allocation3], 1
    %15 = vsyncpa %s14, 0
    %16 = vsyncpa [#allocation6], 0
    %17 = vsyncpa [#allocation9], 0
    %18 = vsyncpa [#allocation4], 0
    %s19 = scalar_lea.sflag [#allocation4], 1
    %20 = vsyncpa %s19, 0
    loop: start=0, step=1, limit=4
    $region2: #{tpu_custom_call.1} parent=1 // loop_pre_header
      _
    $region3: #{tpu_custom_call.1} parent=1 // loop_header
      %s22 = sphi 0, %s26
      %p23 = scmp.ge.s32.totalorder %s22, 4
      %s32 = sphi 0, %s34
      %s35 = sphi 0, %s32
      %s36 = sphi 0, %s35
      %s52 = sphi 0, %s36
      %s56 = sphi 0, %s56
      %s58 = sphi 0, %s56
      %s59 = sphi 0, %s58
      %s73 = sphi 0, %s59
      %s77 = sphi 0, %s77
      %s79 = sphi 0, %s77
      %s80 = sphi 0, %s79
      %s94 = sphi 0, %s80
      %s98 = sphi 0, %s98
      %s100 = sphi 0, %s98
      %s101 = sphi 0, %s100
      %s115 = sphi 0, %s101
      %s119 = sphi 0, %s119
      %s121 = sphi 0, %s119
      %s122 = sphi 0, %s121
      %s136 = sphi 0, %s122
      %s140 = sphi 0, %s140
      %s142 = sphi 0, %s140
      %s143 = sphi 0, %s142
      %s157 = sphi 0, %s143
      %s161 = sphi 0, %s161
      %s163 = sphi 0, %s161
      %s164 = sphi 0, %s163
      %s178 = sphi 0, %s164
      %s182 = sphi 0, %s182
      %s184 = sphi 0, %s182
      %s185 = sphi 0, %s184
      %s199 = sphi 0, %s185
      %s205 = sphi 0, %s207
      %s208 = sphi 0, %s205
      %s209 = sphi 0, %s208
      %s225 = sphi 0, %s209
    $region4: #{tpu_custom_call.1} parent=1 // loop_header_branch
      %25 = sbr.rel (%p23) target = $region8
    $region5: #{tpu_custom_call.1} parent=1 // loop_body
      %s27 = ssub.s32 %s22, 1
      %s28 = ssub.s32 %s22, 2
      %s29 = sadd.s32 %s22, 1
      %s30 = ssub.s32 %s22, %s29
      %p31 = scmp.eq.s32.totalorder %s30, 0
      %s33 = sadd.s32 %s32, 1
      %s34 = scalar_select %p31, %s32, %s33
      %p37 = pneg %p31
      %p38 = scmp.eq.s32.totalorder %s22, 1
      %p39 = por %p37, %p38
      %p40 = scmp.ne.s32.totalorder %s32, %s35
      %p41 = scmp.eq.s32.totalorder %s22, 0
      %p42 = por %p40, %p41
      %p43 = scmp.ne.s32.totalorder %s32, %s35
      %p44 = scmp.eq.s32.totalorder %s27, 1
      %p45 = por %p43, %p44
      %p46 = scmp.ne.s32.totalorder %s35, %s36
      %p47 = scmp.eq.s32.totalorder %s27, 0
      %p48 = por %p46, %p47
      %p49 = scmp.ne.s32.totalorder %s35, %s36
      %p50 = scmp.eq.s32.totalorder %s28, 1
      %p51 = por %p49, %p50
      %p53 = scmp.ne.s32.totalorder %s36, %s52
      %p54 = scmp.eq.s32.totalorder %s28, 0
      %p55 = por %p53, %p54
      %s57 = sadd.s32 %s56, 1
      %p60 = scmp.eq.s32.totalorder %s22, 1
      %p61 = scmp.ne.s32.totalorder %s56, %s58
      %p62 = scmp.eq.s32.totalorder %s22, 0
      %p63 = por %p61, %p62
      %p64 = scmp.ne.s32.totalorder %s56, %s58
      %p65 = scmp.eq.s32.totalorder %s27, 1
      %p66 = por %p64, %p65
      %p67 = scmp.ne.s32.totalorder %s58, %s59
      %p68 = scmp.eq.s32.totalorder %s27, 0
      %p69 = por %p67, %p68
      %p70 = scmp.ne.s32.totalorder %s58, %s59
      %p71 = scmp.eq.s32.totalorder %s28, 1
      %p72 = por %p70, %p71
      %p74 = scmp.ne.s32.totalorder %s59, %s73
      %p75 = scmp.eq.s32.totalorder %s28, 0
      %p76 = por %p74, %p75
      %s78 = sadd.s32 %s77, 1
      %p81 = scmp.eq.s32.totalorder %s22, 1
      %p82 = scmp.ne.s32.totalorder %s77, %s79
      %p83 = scmp.eq.s32.totalorder %s22, 0
      %p84 = por %p82, %p83
      %p85 = scmp.ne.s32.totalorder %s77, %s79
      %p86 = scmp.eq.s32.totalorder %s27, 1
      %p87 = por %p85, %p86
      %p88 = scmp.ne.s32.totalorder %s79, %s80
      %p89 = scmp.eq.s32.totalorder %s27, 0
      %p90 = por %p88, %p89
      %p91 = scmp.ne.s32.totalorder %s79, %s80
      %p92 = scmp.eq.s32.totalorder %s28, 1
      %p93 = por %p91, %p92
      %p95 = scmp.ne.s32.totalorder %s80, %s94
      %p96 = scmp.eq.s32.totalorder %s28, 0
      %p97 = por %p95, %p96
      %s99 = sadd.s32 %s98, 1
      %p102 = scmp.eq.s32.totalorder %s22, 1
      %p103 = scmp.ne.s32.totalorder %s98, %s100
      %p104 = scmp.eq.s32.totalorder %s22, 0
      %p105 = por %p103, %p104
      %p106 = scmp.ne.s32.totalorder %s98, %s100
      %p107 = scmp.eq.s32.totalorder %s27, 1
      %p108 = por %p106, %p107
      %p109 = scmp.ne.s32.totalorder %s100, %s101
      %p110 = scmp.eq.s32.totalorder %s27, 0
      %p111 = por %p109, %p110
      %p112 = scmp.ne.s32.totalorder %s100, %s101
      %p113 = scmp.eq.s32.totalorder %s28, 1
      %p114 = por %p112, %p113
      %p116 = scmp.ne.s32.totalorder %s101, %s115
      %p117 = scmp.eq.s32.totalorder %s28, 0
      %p118 = por %p116, %p117
      %s120 = sadd.s32 %s119, 1
      %p123 = scmp.eq.s32.totalorder %s22, 1
      %p124 = scmp.ne.s32.totalorder %s119, %s121
      %p125 = scmp.eq.s32.totalorder %s22, 0
      %p126 = por %p124, %p125
      %p127 = scmp.ne.s32.totalorder %s119, %s121
      %p128 = scmp.eq.s32.totalorder %s27, 1
      %p129 = por %p127, %p128
      %p130 = scmp.ne.s32.totalorder %s121, %s122
      %p131 = scmp.eq.s32.totalorder %s27, 0
      %p132 = por %p130, %p131
      %p133 = scmp.ne.s32.totalorder %s121, %s122
      %p134 = scmp.eq.s32.totalorder %s28, 1
      %p135 = por %p133, %p134
      %p137 = scmp.ne.s32.totalorder %s122, %s136
      %p138 = scmp.eq.s32.totalorder %s28, 0
      %p139 = por %p137, %p138
      %s141 = sadd.s32 %s140, 1
      %p144 = scmp.eq.s32.totalorder %s22, 1
      %p145 = scmp.ne.s32.totalorder %s140, %s142
      %p146 = scmp.eq.s32.totalorder %s22, 0
      %p147 = por %p145, %p146
      %p148 = scmp.ne.s32.totalorder %s140, %s142
      %p149 = scmp.eq.s32.totalorder %s27, 1
      %p150 = por %p148, %p149
      %p151 = scmp.ne.s32.totalorder %s142, %s143
      %p152 = scmp.eq.s32.totalorder %s27, 0
      %p153 = por %p151, %p152
      %p154 = scmp.ne.s32.totalorder %s142, %s143
      %p155 = scmp.eq.s32.totalorder %s28, 1
      %p156 = por %p154, %p155
      %p158 = scmp.ne.s32.totalorder %s143, %s157
      %p159 = scmp.eq.s32.totalorder %s28, 0
      %p160 = por %p158, %p159
      %s162 = sadd.s32 %s161, 1
      %p165 = scmp.eq.s32.totalorder %s22, 1
      %p166 = scmp.ne.s32.totalorder %s161, %s163
      %p167 = scmp.eq.s32.totalorder %s22, 0
      %p168 = por %p166, %p167
      %p169 = scmp.ne.s32.totalorder %s161, %s163
      %p170 = scmp.eq.s32.totalorder %s27, 1
      %p171 = por %p169, %p170
      %p172 = scmp.ne.s32.totalorder %s163, %s164
      %p173 = scmp.eq.s32.totalorder %s27, 0
      %p174 = por %p172, %p173
      %p175 = scmp.ne.s32.totalorder %s163, %s164
      %p176 = scmp.eq.s32.totalorder %s28, 1
      %p177 = por %p175, %p176
      %p179 = scmp.ne.s32.totalorder %s164, %s178
      %p180 = scmp.eq.s32.totalorder %s28, 0
      %p181 = por %p179, %p180
      %s183 = sadd.s32 %s182, 1
      %p186 = scmp.eq.s32.totalorder %s22, 1
      %p187 = scmp.ne.s32.totalorder %s182, %s184
      %p188 = scmp.eq.s32.totalorder %s22, 0
      %p189 = por %p187, %p188
      %p190 = scmp.ne.s32.totalorder %s182, %s184
      %p191 = scmp.eq.s32.totalorder %s27, 1
      %p192 = por %p190, %p191
      %p193 = scmp.ne.s32.totalorder %s184, %s185
      %p194 = scmp.eq.s32.totalorder %s27, 0
      %p195 = por %p193, %p194
      %p196 = scmp.ne.s32.totalorder %s184, %s185
      %p197 = scmp.eq.s32.totalorder %s28, 1
      %p198 = por %p196, %p197
      %p200 = scmp.ne.s32.totalorder %s185, %s199
      %p201 = scmp.eq.s32.totalorder %s28, 0
      %p202 = por %p200, %p201
      %s203 = ssub.s32 %s22, %s29
      %p204 = scmp.eq.s32.totalorder %s203, 0
      %s206 = sadd.s32 %s205, 1
      %s207 = scalar_select %p204, %s205, %s206
      %p210 = pneg %p204
      %p211 = scmp.eq.s32.totalorder %s22, 1
      %p212 = por %p210, %p211
      %p213 = scmp.ne.s32.totalorder %s205, %s208
      %p214 = scmp.eq.s32.totalorder %s22, 0
      %p215 = por %p213, %p214
      %p216 = scmp.ne.s32.totalorder %s205, %s208
      %p217 = scmp.eq.s32.totalorder %s27, 1
      %p218 = por %p216, %p217
      %p219 = scmp.ne.s32.totalorder %s208, %s209
      %p220 = scmp.eq.s32.totalorder %s27, 0
      %p221 = por %p219, %p220
      %p222 = scmp.ne.s32.totalorder %s208, %s209
      %p223 = scmp.eq.s32.totalorder %s28, 1
      %p224 = por %p222, %p223
      %p226 = scmp.ne.s32.totalorder %s209, %s225
      %p227 = scmp.eq.s32.totalorder %s28, 0
      %p228 = por %p226, %p227
      %p229 = scmp.le.s32.totalorder 1, %s22
      %p230 = scmp.lt.s32.totalorder %s22, 3
      %p231 = pnand %p229, %p230
      %p232 = pneg %p231
      // Predicated region
      $region9: #{tpu_custom_call.1} parent=5 // pred_check
        _
      $region10: #{tpu_custom_call.1} parent=5 // pred_check_branch
        %234 = sbr.rel (%p231) target = $region12
      $region11: #{tpu_custom_call.1} parent=5 // pred_region
        %s235 = ssub.s32 %s22, 1
        // Predicated region
        $region13: #{tpu_custom_call.1} parent=11 // pred_check
          %p236 = pneg %p69
        $region14: #{tpu_custom_call.1} parent=11 // pred_check_branch
          %238 = sbr.rel (%p236) target = $region16
        $region15: #{tpu_custom_call.1} parent=11 // pred_region
          %s240 = ssub.s32 1024, 1024
          %241 = vsyncadd [#allocation6], %s240
          %s242 = sshll.u32 [#allocation5], 4
          %s243 = int_to_ptr.vmem [resolvable:$true] %s242
          %248 = dma.hbm_to_vmem [thread:$0]  %s1, 1024, %s243, [#allocation6], 64, 64, 4
        $region16: #{tpu_custom_call.1} parent=11 // pred_fallthru
          _
        // Predicated region
        $region17: #{tpu_custom_call.1} parent=11 // pred_check
          %p249 = pneg %p90
        $region18: #{tpu_custom_call.1} parent=11 // pred_check_branch
          %251 = sbr.rel (%p249) target = $region20
        $region19: #{tpu_custom_call.1} parent=11 // pred_region
          %s253 = ssub.s32 1024, 1024
          %254 = vsyncadd [#allocation6], %s253
          %s255 = sshll.u32 [#allocation7], 4
          %s256 = int_to_ptr.vmem [resolvable:$true] %s255
          %261 = dma.hbm_to_vmem [thread:$0]  %s2, 1024, %s256, [#allocation6], 64, 64, 4
        $region20: #{tpu_custom_call.1} parent=11 // pred_fallthru
          _
        // Predicated region
        $region21: #{tpu_custom_call.1} parent=11 // pred_check
          %p262 = pneg %p111
        $region22: #{tpu_custom_call.1} parent=11 // pred_check_branch
          %264 = sbr.rel (%p262) target = $region24
        $region23: #{tpu_custom_call.1} parent=11 // pred_region
          %s266 = ssub.s32 1024, 1024
          %267 = vsyncadd [#allocation9], %s266
          %s268 = sshll.u32 [#allocation8], 4
          %s269 = int_to_ptr.vmem [resolvable:$true] %s268
          %274 = dma.hbm_to_vmem [thread:$0]  %s3, 1024, %s269, [#allocation9], 64, 64, 4
        $region24: #{tpu_custom_call.1} parent=11 // pred_fallthru
          _
        // Predicated region
        $region25: #{tpu_custom_call.1} parent=11 // pred_check
          %p275 = pneg %p132
        $region26: #{tpu_custom_call.1} parent=11 // pred_check_branch
          %277 = sbr.rel (%p275) target = $region28
        $region27: #{tpu_custom_call.1} parent=11 // pred_region
          %s279 = ssub.s32 1024, 1024
          %280 = vsyncadd [#allocation9], %s279
          %s281 = sshll.u32 [#allocation10], 4
          %s282 = int_to_ptr.vmem [resolvable:$true] %s281
          %287 = dma.hbm_to_vmem [thread:$0]  %s4, 1024, %s282, [#allocation9], 64, 64, 4
        $region28: #{tpu_custom_call.1} parent=11 // pred_fallthru
          _
        // Predicated region
        $region29: #{tpu_custom_call.1} parent=11 // pred_check
          %p288 = pneg %p153
        $region30: #{tpu_custom_call.1} parent=11 // pred_check_branch
          %290 = sbr.rel (%p288) target = $region32
        $region31: #{tpu_custom_call.1} parent=11 // pred_region
          _
        $region32: #{tpu_custom_call.1} parent=11 // pred_fallthru
          _
        // Predicated region
        $region33: #{tpu_custom_call.1} parent=11 // pred_check
          %p291 = pneg %p174
        $region34: #{tpu_custom_call.1} parent=11 // pred_check_branch
          %293 = sbr.rel (%p291) target = $region36
        $region35: #{tpu_custom_call.1} parent=11 // pred_region
          _
        $region36: #{tpu_custom_call.1} parent=11 // pred_fallthru
          _
        // Predicated region
        $region37: #{tpu_custom_call.1} parent=11 // pred_check
          %p294 = pneg %p195
        $region38: #{tpu_custom_call.1} parent=11 // pred_check_branch
          %296 = sbr.rel (%p294) target = $region40
        $region39: #{tpu_custom_call.1} parent=11 // pred_region
          _
        $region40: #{tpu_custom_call.1} parent=11 // pred_fallthru
          _
      $region12: #{tpu_custom_call.1} parent=5 // pred_fallthru
        _
      %p297 = scmp.lt.s32.totalorder %s22, 2
      // Predicated region
      $region41: #{tpu_custom_call.1} parent=5 // pred_check
        %p298 = pneg %p297
      $region42: #{tpu_custom_call.1} parent=5 // pred_check_branch
        %300 = sbr.rel (%p298) target = $region44
      $region43: #{tpu_custom_call.1} parent=5 // pred_region
        // Predicated region
        $region45: #{tpu_custom_call.1} parent=43 // pred_check
          %p301 = pneg %p42
        $region46: #{tpu_custom_call.1} parent=43 // pred_check_branch
          %303 = sbr.rel (%p301) target = $region48
        $region47: #{tpu_custom_call.1} parent=43 // pred_region
          %s304 = sand.u32 %s32, 1
          %s305 = scalar_lea.sflag [#allocation3], %s304
          %s306 = sand.u32 %s32, 1
          %s307 = smul.addr %s306, 128
          %s308 = scalar_lea.vmem [#allocation2], %s307
          %s309 = smul.u32 16, %s22
          %s311 = ssub.s32 2048, 2048
          %312 = vsyncadd %s305, %s311
          %s313 = smul.addr %s309, 128
          %s314 = scalar_lea.hbm %s0, %s313
          %s315 = sshll.u32 %s308, 4
          %s316 = int_to_ptr.vmem [resolvable:$true] %s315
          %321 = dma.hbm_to_vmem [thread:$0]  %s314, 2048, %s316, %s305, 128, 128, 8
        $region48: #{tpu_custom_call.1} parent=43 // pred_fallthru
          _
      $region44: #{tpu_custom_call.1} parent=5 // pred_fallthru
        _
      %p322 = scmp.le.s32.totalorder 1, %s22
      %p323 = scmp.lt.s32.totalorder %s22, 3
      %p324 = pnand %p322, %p323
      %p325 = pneg %p324
      // Predicated region
      $region49: #{tpu_custom_call.1} parent=5 // pred_check
        _
      $region50: #{tpu_custom_call.1} parent=5 // pred_check_branch
        %327 = sbr.rel (%p324) target = $region52
      $region51: #{tpu_custom_call.1} parent=5 // pred_region
        %s328 = ssub.s32 %s22, 1
        %s329 = sand.u32 %s35, 1
        %s330 = scalar_lea.sflag [#allocation3], %s329
        %s331 = sand.u32 %s35, 1
        %s332 = smul.addr %s331, 128
        %s333 = scalar_lea.vmem [#allocation2], %s332
        // Predicated region
        $region53: #{tpu_custom_call.1} parent=51 // pred_check
          %p334 = pneg %p48
        $region54: #{tpu_custom_call.1} parent=51 // pred_check_branch
          %336 = sbr.rel (%p334) target = $region56
        $region55: #{tpu_custom_call.1} parent=51 // pred_region
          %337 = dma.done %s330, 2048
        $region56: #{tpu_custom_call.1} parent=51 // pred_fallthru
          _
        // Predicated region
        $region57: #{tpu_custom_call.1} parent=51 // pred_check
          %p338 = pneg %p69
        $region58: #{tpu_custom_call.1} parent=51 // pred_check_branch
          %340 = sbr.rel (%p338) target = $region60
        $region59: #{tpu_custom_call.1} parent=51 // pred_region
          %341 = dma.done [#allocation6], 1024
        $region60: #{tpu_custom_call.1} parent=51 // pred_fallthru
          _
        // Predicated region
        $region61: #{tpu_custom_call.1} parent=51 // pred_check
          %p342 = pneg %p90
        $region62: #{tpu_custom_call.1} parent=51 // pred_check_branch
          %344 = sbr.rel (%p342) target = $region64
        $region63: #{tpu_custom_call.1} parent=51 // pred_region
          %345 = dma.done [#allocation6], 1024
        $region64: #{tpu_custom_call.1} parent=51 // pred_fallthru
          _
        // Predicated region
        $region65: #{tpu_custom_call.1} parent=51 // pred_check
          %p346 = pneg %p111
        $region66: #{tpu_custom_call.1} parent=51 // pred_check_branch
          %348 = sbr.rel (%p346) target = $region68
        $region67: #{tpu_custom_call.1} parent=51 // pred_region
          %349 = dma.done [#allocation9], 1024
        $region68: #{tpu_custom_call.1} parent=51 // pred_fallthru
          _
        // Predicated region
        $region69: #{tpu_custom_call.1} parent=51 // pred_check
          %p350 = pneg %p132
        $region70: #{tpu_custom_call.1} parent=51 // pred_check_branch
          %352 = sbr.rel (%p350) target = $region72
        $region71: #{tpu_custom_call.1} parent=51 // pred_region
          %353 = dma.done [#allocation9], 1024
        $region72: #{tpu_custom_call.1} parent=51 // pred_fallthru
          _
        %s354 = sand.u32 %s35, 1
        %s355 = scalar_lea.sflag [#allocation3], %s354
        %s356 = sand.u32 %s35, 1
        %s357 = smul.addr %s356, 128
        %s358 = scalar_lea.vmem [#allocation2], %s357
        %p359 = pneg %p48
        %p360 = pneg %p45
        %p361 = pneg %p69
        %p362 = pneg %p66
        %p363 = pneg %p90
        %p364 = pneg %p87
        %p365 = pneg %p111
        %p366 = pneg %p108
        %p367 = pneg %p132
        %p368 = pneg %p129
        %p369 = pneg %p153
        %p370 = pneg %p150
        %p371 = pneg %p174
        %p372 = pneg %p171
        %p373 = pneg %p195
        %p374 = pneg %p192
        %p375 = pneg %p221
        %p376 = pneg %p218
        %s377 = sand.u32 %s208, 1
        %s378 = scalar_lea.sflag [#allocation4], %s377
        %s379 = sand.u32 %s208, 1
        %s380 = smul.addr %s379, 128
        %s381 = scalar_lea.vmem [#allocation11], %s380
        %s382 = smul.u32 16, %s27
        %s383 = smul.u32 16, %s27
        %v385 = vld [vmem:[#allocation5] sm:$0xf]
        %v386 = vld [vmem:[#allocation5 + $0x4] sm:$0xf]
        %v387 = vld [vmem:[#allocation5 + $0x8] sm:$0xf]
        %v388 = vld [vmem:[#allocation5 + $0xc] sm:$0xf]
        %v389 = vld [vmem:[#allocation5 + $0x10] sm:$0xf]
        %v390 = vld [vmem:[#allocation5 + $0x14] sm:$0xf]
        %v391 = vld [vmem:[#allocation5 + $0x18] sm:$0xf]
        %v392 = vld [vmem:[#allocation5 + $0x1c] sm:$0xf]
        %v393 = vld [vmem:[#allocation5 + $0x20] sm:$0xf]
        %v394 = vld [vmem:[#allocation5 + $0x24] sm:$0xf]
        %v395 = vld [vmem:[#allocation5 + $0x28] sm:$0xf]
        %v396 = vld [vmem:[#allocation5 + $0x2c] sm:$0xf]
        %v397 = vld [vmem:[#allocation5 + $0x30] sm:$0xf]
        %v398 = vld [vmem:[#allocation5 + $0x34] sm:$0xf]
        %v399 = vld [vmem:[#allocation5 + $0x38] sm:$0xf]
        %v400 = vld [vmem:[#allocation5 + $0x3c] sm:$0xf]
        %v401 = vld [vmem:[%s333] sm:$0xff]
        %v402 = vld [vmem:[%s333 + $0x8] sm:$0xff]
        %v403 = vld [vmem:[%s333 + $0x10] sm:$0xff]
        %v404 = vld [vmem:[%s333 + $0x18] sm:$0xff]
        %v405 = vld [vmem:[%s333 + $0x20] sm:$0xff]
        %v406 = vld [vmem:[%s333 + $0x28] sm:$0xff]
        %v407 = vld [vmem:[%s333 + $0x30] sm:$0xff]
        %v408 = vld [vmem:[%s333 + $0x38] sm:$0xff]
        %v409 = vld [vmem:[%s333 + $0x40] sm:$0xff]
        %v410 = vld [vmem:[%s333 + $0x48] sm:$0xff]
        %v411 = vld [vmem:[%s333 + $0x50] sm:$0xff]
        %v412 = vld [vmem:[%s333 + $0x58] sm:$0xff]
        %v413 = vld [vmem:[%s333 + $0x60] sm:$0xff]
        %v414 = vld [vmem:[%s333 + $0x68] sm:$0xff]
        %v415 = vld [vmem:[%s333 + $0x70] sm:$0xff]
        %v416 = vld [vmem:[%s333 + $0x78] sm:$0xff]
        %v417 = vpack.c.bf16 %v402, %v401
        %v418 = vpack.c.bf16 %v404, %v403
        %v419 = vpack.c.bf16 %v406, %v405
        %v420 = vpack.c.bf16 %v408, %v407
        %v421 = vpack.c.bf16 %v410, %v409
        %v422 = vpack.c.bf16 %v412, %v411
        %v423 = vpack.c.bf16 %v414, %v413
        %v424 = vpack.c.bf16 %v416, %v415
        %v425 = vld [vmem:[%s6] sm:$0x1]
        %v426 = vlaneseq
        %v427 = vshrl.u32 %v426, 7
        %v428 = vsub.s32 0, %v427
        %v429 = vrot.slane %v425, %v428
        %v446 = vunpack.c.l.b16 %v385
        %v447 = vunpack.c.l.b16 %v386
        %v448 = vunpack.c.l.b16 %v387
        %v449 = vunpack.c.l.b16 %v388
        %v450 = vunpack.c.l.b16 %v389
        %v451 = vunpack.c.l.b16 %v390
        %v452 = vunpack.c.l.b16 %v391
        %v453 = vunpack.c.l.b16 %v392
        %v454 = vunpack.c.l.b16 %v393
        %v455 = vunpack.c.l.b16 %v394
        %v456 = vunpack.c.l.b16 %v395
        %v457 = vunpack.c.l.b16 %v396
        %v458 = vunpack.c.l.b16 %v397
        %v459 = vunpack.c.l.b16 %v398
        %v460 = vunpack.c.l.b16 %v399
        %v461 = vunpack.c.l.b16 %v400
        %v462 = vpack.c.b16 %v447, %v446
        %v463 = vpack.c.b16 %v449, %v448
        %v464 = vpack.c.b16 %v451, %v450
        %v465 = vpack.c.b16 %v453, %v452
        %v466 = vpack.c.b16 %v455, %v454
        %v467 = vpack.c.b16 %v457, %v456
        %v468 = vpack.c.b16 %v459, %v458
        %v469 = vpack.c.b16 %v461, %v460
        %478 = vmatprep.subr.bf16.mxu0 0
        %479 = vmatpush1.bf16.msra.mxu0 %v462
        %480 = vmatprep.subr.bf16.mxu0 0
        %481 = vmatpush1.bf16.msra.mxu0 %v463
        %482 = vmatprep.subr.bf16.mxu0 0
        %483 = vmatpush1.bf16.msra.mxu0 %v464
        %484 = vmatprep.subr.bf16.mxu0 0
        %485 = vmatpush1.bf16.msra.mxu0 %v465
        %486 = vmatprep.subr.bf16.mxu0 0
        %487 = vmatpush1.bf16.msra.mxu0 %v466
        %488 = vmatprep.subr.bf16.mxu0 0
        %489 = vmatpush1.bf16.msra.mxu0 %v467
        %490 = vmatprep.subr.bf16.mxu0 0
        %491 = vmatpush1.bf16.msra.mxu0 %v468
        %492 = vmatprep.subr.bf16.mxu0 0
        %493 = vmatpush1.bf16.msra.mxu0 %v469
        %494 = vmatprep.subr.bf16.mxu0 0
        %495 = vmatpush1.bf16.msra.mxu0 0
        %496 = vmatprep.subr.bf16.mxu0 0
        %497 = vmatpush1.bf16.msra.mxu0 0
        %498 = vmatprep.subr.bf16.mxu0 0
        %499 = vmatpush1.bf16.msra.mxu0 0
        %500 = vmatprep.subr.bf16.mxu0 0
        %501 = vmatpush1.bf16.msra.mxu0 0
        %502 = vmatprep.subr.bf16.mxu0 0
        %503 = vmatpush1.bf16.msra.mxu0 0
        %504 = vmatprep.subr.bf16.mxu0 0
        %505 = vmatpush1.bf16.msra.mxu0 0
        %506 = vmatprep.subr.bf16.mxu0 0
        %507 = vmatpush1.bf16.msra.mxu0 0
        %508 = vmatprep.subr.bf16.mxu0 0
        %509 = vmatpush1.bf16.msra.mxu0 0
        %510 = vmatprep.mubr.bf16.mxu0 0
        %511 = vmatmul.mubr.bf16.gmra.mrb[0].mxu0 %v417
        %v512 = vpop.f32.mrb[0].mxu0
        %v513 = vadd.f32 %v429, %v512
        %v514 = vpop.f32.mrb[0].mxu0
        %v515 = vpop.f32.mrb[0].mxu0
        %v516 = vadd.f32 %v429, %v515
        %v517 = vpop.f32.mrb[0].mxu0
        %518 = vmatprep.mubr.bf16.mxu0 0
        %519 = vmatmul.mubr.bf16.gmra.mrb[0].mxu0 %v418
        %v520 = vpop.f32.mrb[0].mxu0
        %v521 = vadd.f32 %v429, %v520
        %v522 = vpop.f32.mrb[0].mxu0
        %v523 = vpop.f32.mrb[0].mxu0
        %v524 = vadd.f32 %v429, %v523
        %v525 = vpop.f32.mrb[0].mxu0
        %526 = vmatprep.mubr.bf16.mxu0 0
        %527 = vmatmul.mubr.bf16.gmra.mrb[0].mxu0 %v419
        %v528 = vpop.f32.mrb[0].mxu0
        %v529 = vadd.f32 %v429, %v528
        %v530 = vpop.f32.mrb[0].mxu0
        %v531 = vpop.f32.mrb[0].mxu0
        %v532 = vadd.f32 %v429, %v531
        %v533 = vpop.f32.mrb[0].mxu0
        %534 = vmatprep.mubr.bf16.mxu0 0
        %535 = vmatmul.mubr.bf16.gmra.mrb[0].mxu0 %v420
        %v536 = vpop.f32.mrb[0].mxu0
        %v537 = vadd.f32 %v429, %v536
        %v538 = vpop.f32.mrb[0].mxu0
        %v539 = vpop.f32.mrb[0].mxu0
        %v540 = vadd.f32 %v429, %v539
        %v541 = vpop.f32.mrb[0].mxu0
        %542 = vmatprep.mubr.bf16.mxu0 0
        %543 = vmatmul.mubr.bf16.gmra.mrb[0].mxu0 %v421
        %v544 = vpop.f32.mrb[0].mxu0
        %v545 = vadd.f32 %v429, %v544
        %v546 = vpop.f32.mrb[0].mxu0
        %v547 = vpop.f32.mrb[0].mxu0
        %v548 = vadd.f32 %v429, %v547
        %v549 = vpop.f32.mrb[0].mxu0
        %550 = vmatprep.mubr.bf16.mxu0 0
        %551 = vmatmul.mubr.bf16.gmra.mrb[0].mxu0 %v422
        %v552 = vpop.f32.mrb[0].mxu0
        %v553 = vadd.f32 %v429, %v552
        %v554 = vpop.f32.mrb[0].mxu0
        %v555 = vpop.f32.mrb[0].mxu0
        %v556 = vadd.f32 %v429, %v555
        %v557 = vpop.f32.mrb[0].mxu0
        %558 = vmatprep.mubr.bf16.mxu0 0
        %559 = vmatmul.mubr.bf16.gmra.mrb[0].mxu0 %v423
        %v560 = vpop.f32.mrb[0].mxu0
        %v561 = vadd.f32 %v429, %v560
        %v562 = vpop.f32.mrb[0].mxu0
        %v563 = vpop.f32.mrb[0].mxu0
        %v564 = vadd.f32 %v429, %v563
        %v565 = vpop.f32.mrb[0].mxu0
        %566 = vmatprep.mubr.bf16.mxu0 0
        %567 = vmatmul.mubr.bf16.gmra.mrb[0].mxu0 %v424
        %v568 = vpop.f32.mrb[0].mxu0
        %v569 = vadd.f32 %v429, %v568
        %v570 = vpop.f32.mrb[0].mxu0
        %v571 = vpop.f32.mrb[0].mxu0
        %v572 = vadd.f32 %v429, %v571
        %v573 = vpop.f32.mrb[0].mxu0
        %574 = vdwg.mxu0
        %v575 = vld [vmem:[%s5] sm:$0x1]
        %vm576 = vcmp.gt.f32.partialorder %v513, 0.0
        %vm577 = vcmp.gt.f32.partialorder %v516, 0.0
        %vm578 = vcmp.gt.f32.partialorder %v521, 0.0
        %vm579 = vcmp.gt.f32.partialorder %v524, 0.0
        %vm580 = vcmp.gt.f32.partialorder %v529, 0.0
        %vm581 = vcmp.gt.f32.partialorder %v532, 0.0
        %vm582 = vcmp.gt.f32.partialorder %v537, 0.0
        %vm583 = vcmp.gt.f32.partialorder %v540, 0.0
        %vm584 = vcmp.gt.f32.partialorder %v545, 0.0
        %vm585 = vcmp.gt.f32.partialorder %v548, 0.0
        %vm586 = vcmp.gt.f32.partialorder %v553, 0.0
        %vm587 = vcmp.gt.f32.partialorder %v556, 0.0
        %vm588 = vcmp.gt.f32.partialorder %v561, 0.0
        %vm589 = vcmp.gt.f32.partialorder %v564, 0.0
        %vm590 = vcmp.gt.f32.partialorder %v569, 0.0
        %vm591 = vcmp.gt.f32.partialorder %v572, 0.0
        %v592 = vlaneseq
        %v593 = vshrl.u32 %v592, 7
        %v594 = vsub.s32 0, %v593
        %v595 = vrot.slane %v575, %v594
        %v596 = vmul.f32 %v595, %v513
        %v597 = vmul.f32 %v595, %v516
        %v598 = vmul.f32 %v595, %v521
        %v599 = vmul.f32 %v595, %v524
        %v600 = vmul.f32 %v595, %v529
        %v601 = vmul.f32 %v595, %v532
        %v602 = vmul.f32 %v595, %v537
        %v603 = vmul.f32 %v595, %v540
        %v604 = vmul.f32 %v595, %v545
        %v605 = vmul.f32 %v595, %v548
        %v606 = vmul.f32 %v595, %v553
        %v607 = vmul.f32 %v595, %v556
        %v608 = vmul.f32 %v595, %v561
        %v609 = vmul.f32 %v595, %v564
        %v610 = vmul.f32 %v595, %v569
        %v611 = vmul.f32 %v595, %v572
        %v612 = vsel %vm576, %v513, %v596
        %v613 = vsel %vm577, %v516, %v597
        %v614 = vsel %vm578, %v521, %v598
        %v615 = vsel %vm579, %v524, %v599
        %v616 = vsel %vm580, %v529, %v600
        %v617 = vsel %vm581, %v532, %v601
        %v618 = vsel %vm582, %v537, %v602
        %v619 = vsel %vm583, %v540, %v603
        %v620 = vsel %vm584, %v545, %v604
        %v621 = vsel %vm585, %v548, %v605
        %v622 = vsel %vm586, %v553, %v606
        %v623 = vsel %vm587, %v556, %v607
        %v624 = vsel %vm588, %v561, %v608
        %v625 = vsel %vm589, %v564, %v609
        %v626 = vsel %vm590, %v569, %v610
        %v627 = vsel %vm591, %v572, %v611
        %v628 = vld [vmem:[#allocation7] sm:$0xf]
        %v629 = vld [vmem:[#allocation7 + $0x4] sm:$0xf]
        %v630 = vld [vmem:[#allocation7 + $0x8] sm:$0xf]
        %v631 = vld [vmem:[#allocation7 + $0xc] sm:$0xf]
        %v632 = vld [vmem:[#allocation7 + $0x10] sm:$0xf]
        %v633 = vld [vmem:[#allocation7 + $0x14] sm:$0xf]
        %v634 = vld [vmem:[#allocation7 + $0x18] sm:$0xf]
        %v635 = vld [vmem:[#allocation7 + $0x1c] sm:$0xf]
        %v636 = vld [vmem:[#allocation7 + $0x20] sm:$0xf]
        %v637 = vld [vmem:[#allocation7 + $0x24] sm:$0xf]
        %v638 = vld [vmem:[#allocation7 + $0x28] sm:$0xf]
        %v639 = vld [vmem:[#allocation7 + $0x2c] sm:$0xf]
        %v640 = vld [vmem:[#allocation7 + $0x30] sm:$0xf]
        %v641 = vld [vmem:[#allocation7 + $0x34] sm:$0xf]
        %v642 = vld [vmem:[#allocation7 + $0x38] sm:$0xf]
        %v643 = vld [vmem:[#allocation7 + $0x3c] sm:$0xf]
        %v644 = vpack.c.bf16 %v613, %v612
        %v645 = vpack.c.bf16 %v615, %v614
        %v646 = vpack.c.bf16 %v617, %v616
        %v647 = vpack.c.bf16 %v619, %v618
        %v648 = vpack.c.bf16 %v621, %v620
        %v649 = vpack.c.bf16 %v623, %v622
        %v650 = vpack.c.bf16 %v625, %v624
        %v651 = vpack.c.bf16 %v627, %v626
        %v652 = vld [vmem:[%s6 + $0x1] sm:$0x1]
        %v653 = vlaneseq
        %v654 = vshrl.u32 %v653, 7
        %v655 = vsub.s32 0, %v654
        %v656 = vrot.slane %v652, %v655
        %v673 = vunpack.c.l.b16 %v628
        %v674 = vunpack.c.l.b16 %v629
        %v675 = vunpack.c.l.b16 %v630
        %v676 = vunpack.c.l.b16 %v631
        %v677 = vunpack.c.l.b16 %v632
        %v678 = vunpack.c.l.b16 %v633
        %v679 = vunpack.c.l.b16 %v634
        %v680 = vunpack.c.l.b16 %v635
        %v681 = vunpack.c.l.b16 %v636
        %v682 = vunpack.c.l.b16 %v637
        %v683 = vunpack.c.l.b16 %v638
        %v684 = vunpack.c.l.b16 %v639
        %v685 = vunpack.c.l.b16 %v640
        %v686 = vunpack.c.l.b16 %v641
        %v687 = vunpack.c.l.b16 %v642
        %v688 = vunpack.c.l.b16 %v643
        %v689 = vpack.c.b16 %v674, %v673
        %v690 = vpack.c.b16 %v676, %v675
        %v691 = vpack.c.b16 %v678, %v677
        %v692 = vpack.c.b16 %v680, %v679
        %v693 = vpack.c.b16 %v682, %v681
        %v694 = vpack.c.b16 %v684, %v683
        %v695 = vpack.c.b16 %v686, %v685
        %v696 = vpack.c.b16 %v688, %v687
        %705 = vmatprep.subr.bf16.mxu0 0
        %706 = vmatpush1.bf16.msra.mxu0 %v689
        %707 = vmatprep.subr.bf16.mxu0 0
        %708 = vmatpush1.bf16.msra.mxu0 %v690
        %709 = vmatprep.subr.bf16.mxu0 0
        %710 = vmatpush1.bf16.msra.mxu0 %v691
        %711 = vmatprep.subr.bf16.mxu0 0
        %712 = vmatpush1.bf16.msra.mxu0 %v692
        %713 = vmatprep.subr.bf16.mxu0 0
        %714 = vmatpush1.bf16.msra.mxu0 %v693
        %715 = vmatprep.subr.bf16.mxu0 0
        %716 = vmatpush1.bf16.msra.mxu0 %v694
        %717 = vmatprep.subr.bf16.mxu0 0
        %718 = vmatpush1.bf16.msra.mxu0 %v695
        %719 = vmatprep.subr.bf16.mxu0 0
        %720 = vmatpush1.bf16.msra.mxu0 %v696
        %721 = vmatprep.subr.bf16.mxu0 0
        %722 = vmatpush1.bf16.msra.mxu0 0
        %723 = vmatprep.subr.bf16.mxu0 0
        %724 = vmatpush1.bf16.msra.mxu0 0
        %725 = vmatprep.subr.bf16.mxu0 0
        %726 = vmatpush1.bf16.msra.mxu0 0
        %727 = vmatprep.subr.bf16.mxu0 0
        %728 = vmatpush1.bf16.msra.mxu0 0
        %729 = vmatprep.subr.bf16.mxu0 0
        %730 = vmatpush1.bf16.msra.mxu0 0
        %731 = vmatprep.subr.bf16.mxu0 0
        %732 = vmatpush1.bf16.msra.mxu0 0
        %733 = vmatprep.subr.bf16.mxu0 0
        %734 = vmatpush1.bf16.msra.mxu0 0
        %735 = vmatprep.subr.bf16.mxu0 0
        %736 = vmatpush1.bf16.msra.mxu0 0
        %737 = vmatprep.mubr.bf16.mxu0 0
        %738 = vmatmul.mubr.bf16.gmra.mrb[0].mxu0 %v644
        %v739 = vpop.f32.mrb[0].mxu0
        %v740 = vadd.f32 %v656, %v739
        %v741 = vpop.f32.mrb[0].mxu0
        %v742 = vpop.f32.mrb[0].mxu0
        %v743 = vadd.f32 %v656, %v742
        %v744 = vpop.f32.mrb[0].mxu0
        %745 = vmatprep.mubr.bf16.mxu0 0
        %746 = vmatmul.mubr.bf16.gmra.mrb[0].mxu0 %v645
        %v747 = vpop.f32.mrb[0].mxu0
        %v748 = vadd.f32 %v656, %v747
        %v749 = vpop.f32.mrb[0].mxu0
        %v750 = vpop.f32.mrb[0].mxu0
        %v751 = vadd.f32 %v656, %v750
        %v752 = vpop.f32.mrb[0].mxu0
        %753 = vmatprep.mubr.bf16.mxu0 0
        %754 = vmatmul.mubr.bf16.gmra.mrb[0].mxu0 %v646
        %v755 = vpop.f32.mrb[0].mxu0
        %v756 = vadd.f32 %v656, %v755
        %v757 = vpop.f32.mrb[0].mxu0
        %v758 = vpop.f32.mrb[0].mxu0
        %v759 = vadd.f32 %v656, %v758
        %v760 = vpop.f32.mrb[0].mxu0
        %761 = vmatprep.mubr.bf16.mxu0 0
        %762 = vmatmul.mubr.bf16.gmra.mrb[0].mxu0 %v647
        %v763 = vpop.f32.mrb[0].mxu0
        %v764 = vadd.f32 %v656, %v763
        %v765 = vpop.f32.mrb[0].mxu0
        %v766 = vpop.f32.mrb[0].mxu0
        %v767 = vadd.f32 %v656, %v766
        %v768 = vpop.f32.mrb[0].mxu0
        %769 = vmatprep.mubr.bf16.mxu0 0
        %770 = vmatmul.mubr.bf16.gmra.mrb[0].mxu0 %v648
        %v771 = vpop.f32.mrb[0].mxu0
        %v772 = vadd.f32 %v656, %v771
        %v773 = vpop.f32.mrb[0].mxu0
        %v774 = vpop.f32.mrb[0].mxu0
        %v775 = vadd.f32 %v656, %v774
        %v776 = vpop.f32.mrb[0].mxu0
        %777 = vmatprep.mubr.bf16.mxu0 0
        %778 = vmatmul.mubr.bf16.gmra.mrb[0].mxu0 %v649
        %v779 = vpop.f32.mrb[0].mxu0
        %v780 = vadd.f32 %v656, %v779
        %v781 = vpop.f32.mrb[0].mxu0
        %v782 = vpop.f32.mrb[0].mxu0
        %v783 = vadd.f32 %v656, %v782
        %v784 = vpop.f32.mrb[0].mxu0
        %785 = vmatprep.mubr.bf16.mxu0 0
        %786 = vmatmul.mubr.bf16.gmra.mrb[0].mxu0 %v650
        %v787 = vpop.f32.mrb[0].mxu0
        %v788 = vadd.f32 %v656, %v787
        %v789 = vpop.f32.mrb[0].mxu0
        %v790 = vpop.f32.mrb[0].mxu0
        %v791 = vadd.f32 %v656, %v790
        %v792 = vpop.f32.mrb[0].mxu0
        %793 = vmatprep.mubr.bf16.mxu0 0
        %794 = vmatmul.mubr.bf16.gmra.mrb[0].mxu0 %v651
        %v795 = vpop.f32.mrb[0].mxu0
        %v796 = vadd.f32 %v656, %v795
        %v797 = vpop.f32.mrb[0].mxu0
        %v798 = vpop.f32.mrb[0].mxu0
        %v799 = vadd.f32 %v656, %v798
        %v800 = vpop.f32.mrb[0].mxu0
        %801 = vdwg.mxu0
        %v802 = vld [vmem:[%s5 + $0x1] sm:$0x1]
        %vm803 = vcmp.gt.f32.partialorder %v740, 0.0
        %vm804 = vcmp.gt.f32.partialorder %v743, 0.0
        %vm805 = vcmp.gt.f32.partialorder %v748, 0.0
        %vm806 = vcmp.gt.f32.partialorder %v751, 0.0
        %vm807 = vcmp.gt.f32.partialorder %v756, 0.0
        %vm808 = vcmp.gt.f32.partialorder %v759, 0.0
        %vm809 = vcmp.gt.f32.partialorder %v764, 0.0
        %vm810 = vcmp.gt.f32.partialorder %v767, 0.0
        %vm811 = vcmp.gt.f32.partialorder %v772, 0.0
        %vm812 = vcmp.gt.f32.partialorder %v775, 0.0
        %vm813 = vcmp.gt.f32.partialorder %v780, 0.0
        %vm814 = vcmp.gt.f32.partialorder %v783, 0.0
        %vm815 = vcmp.gt.f32.partialorder %v788, 0.0
        %vm816 = vcmp.gt.f32.partialorder %v791, 0.0
        %vm817 = vcmp.gt.f32.partialorder %v796, 0.0
        %vm818 = vcmp.gt.f32.partialorder %v799, 0.0
        %v819 = vlaneseq
        %v820 = vshrl.u32 %v819, 7
        %v821 = vsub.s32 0, %v820
        %v822 = vrot.slane %v802, %v821
        %v823 = vmul.f32 %v822, %v740
        %v824 = vmul.f32 %v822, %v743
        %v825 = vmul.f32 %v822, %v748
        %v826 = vmul.f32 %v822, %v751
        %v827 = vmul.f32 %v822, %v756
        %v828 = vmul.f32 %v822, %v759
        %v829 = vmul.f32 %v822, %v764
        %v830 = vmul.f32 %v822, %v767
        %v831 = vmul.f32 %v822, %v772
        %v832 = vmul.f32 %v822, %v775
        %v833 = vmul.f32 %v822, %v780
        %v834 = vmul.f32 %v822, %v783
        %v835 = vmul.f32 %v822, %v788
        %v836 = vmul.f32 %v822, %v791
        %v837 = vmul.f32 %v822, %v796
        %v838 = vmul.f32 %v822, %v799
        %v839 = vsel %vm803, %v740, %v823
        %v840 = vsel %vm804, %v743, %v824
        %v841 = vsel %vm805, %v748, %v825
        %v842 = vsel %vm806, %v751, %v826
        %v843 = vsel %vm807, %v756, %v827
        %v844 = vsel %vm808, %v759, %v828
        %v845 = vsel %vm809, %v764, %v829
        %v846 = vsel %vm810, %v767, %v830
        %v847 = vsel %vm811, %v772, %v831
        %v848 = vsel %vm812, %v775, %v832
        %v849 = vsel %vm813, %v780, %v833
        %v850 = vsel %vm814, %v783, %v834
        %v851 = vsel %vm815, %v788, %v835
        %v852 = vsel %vm816, %v791, %v836
        %v853 = vsel %vm817, %v796, %v837
        %v854 = vsel %vm818, %v799, %v838
        %v855 = vld [vmem:[#allocation8] sm:$0xf]
        %v856 = vld [vmem:[#allocation8 + $0x4] sm:$0xf]
        %v857 = vld [vmem:[#allocation8 + $0x8] sm:$0xf]
        %v858 = vld [vmem:[#allocation8 + $0xc] sm:$0xf]
        %v859 = vld [vmem:[#allocation8 + $0x10] sm:$0xf]
        %v860 = vld [vmem:[#allocation8 + $0x14] sm:$0xf]
        %v861 = vld [vmem:[#allocation8 + $0x18] sm:$0xf]
        %v862 = vld [vmem:[#allocation8 + $0x1c] sm:$0xf]
        %v863 = vld [vmem:[#allocation8 + $0x20] sm:$0xf]
        %v864 = vld [vmem:[#allocation8 + $0x24] sm:$0xf]
        %v865 = vld [vmem:[#allocation8 + $0x28] sm:$0xf]
        %v866 = vld [vmem:[#allocation8 + $0x2c] sm:$0xf]
        %v867 = vld [vmem:[#allocation8 + $0x30] sm:$0xf]
        %v868 = vld [vmem:[#allocation8 + $0x34] sm:$0xf]
        %v869 = vld [vmem:[#allocation8 + $0x38] sm:$0xf]
        %v870 = vld [vmem:[#allocation8 + $0x3c] sm:$0xf]
        %v871 = vpack.c.bf16 %v840, %v839
        %v872 = vpack.c.bf16 %v842, %v841
        %v873 = vpack.c.bf16 %v844, %v843
        %v874 = vpack.c.bf16 %v846, %v845
        %v875 = vpack.c.bf16 %v848, %v847
        %v876 = vpack.c.bf16 %v850, %v849
        %v877 = vpack.c.bf16 %v852, %v851
        %v878 = vpack.c.bf16 %v854, %v853
        %v879 = vld [vmem:[%s6 + $0x2] sm:$0x1]
        %v880 = vlaneseq
        %v881 = vshrl.u32 %v880, 7
        %v882 = vsub.s32 0, %v881
        %v883 = vrot.slane %v879, %v882
        %v900 = vunpack.c.l.b16 %v855
        %v901 = vunpack.c.l.b16 %v856
        %v902 = vunpack.c.l.b16 %v857
        %v903 = vunpack.c.l.b16 %v858
        %v904 = vunpack.c.l.b16 %v859
        %v905 = vunpack.c.l.b16 %v860
        %v906 = vunpack.c.l.b16 %v861
        %v907 = vunpack.c.l.b16 %v862
        %v908 = vunpack.c.l.b16 %v863
        %v909 = vunpack.c.l.b16 %v864
        %v910 = vunpack.c.l.b16 %v865
        %v911 = vunpack.c.l.b16 %v866
        %v912 = vunpack.c.l.b16 %v867
        %v913 = vunpack.c.l.b16 %v868
        %v914 = vunpack.c.l.b16 %v869
        %v915 = vunpack.c.l.b16 %v870
        %v916 = vpack.c.b16 %v901, %v900
        %v917 = vpack.c.b16 %v903, %v902
        %v918 = vpack.c.b16 %v905, %v904
        %v919 = vpack.c.b16 %v907, %v906
        %v920 = vpack.c.b16 %v909, %v908
        %v921 = vpack.c.b16 %v911, %v910
        %v922 = vpack.c.b16 %v913, %v912
        %v923 = vpack.c.b16 %v915, %v914
        %932 = vmatprep.subr.bf16.mxu0 0
        %933 = vmatpush1.bf16.msra.mxu0 %v916
        %934 = vmatprep.subr.bf16.mxu0 0
        %935 = vmatpush1.bf16.msra.mxu0 %v917
        %936 = vmatprep.subr.bf16.mxu0 0
        %937 = vmatpush1.bf16.msra.mxu0 %v918
        %938 = vmatprep.subr.bf16.mxu0 0
        %939 = vmatpush1.bf16.msra.mxu0 %v919
        %940 = vmatprep.subr.bf16.mxu0 0
        %941 = vmatpush1.bf16.msra.mxu0 %v920
        %942 = vmatprep.subr.bf16.mxu0 0
        %943 = vmatpush1.bf16.msra.mxu0 %v921
        %944 = vmatprep.subr.bf16.mxu0 0
        %945 = vmatpush1.bf16.msra.mxu0 %v922
        %946 = vmatprep.subr.bf16.mxu0 0
        %947 = vmatpush1.bf16.msra.mxu0 %v923
        %948 = vmatprep.subr.bf16.mxu0 0
        %949 = vmatpush1.bf16.msra.mxu0 0
        %950 = vmatprep.subr.bf16.mxu0 0
        %951 = vmatpush1.bf16.msra.mxu0 0
        %952 = vmatprep.subr.bf16.mxu0 0
        %953 = vmatpush1.bf16.msra.mxu0 0
        %954 = vmatprep.subr.bf16.mxu0 0
        %955 = vmatpush1.bf16.msra.mxu0 0
        %956 = vmatprep.subr.bf16.mxu0 0
        %957 = vmatpush1.bf16.msra.mxu0 0
        %958 = vmatprep.subr.bf16.mxu0 0
        %959 = vmatpush1.bf16.msra.mxu0 0
        %960 = vmatprep.subr.bf16.mxu0 0
        %961 = vmatpush1.bf16.msra.mxu0 0
        %962 = vmatprep.subr.bf16.mxu0 0
        %963 = vmatpush1.bf16.msra.mxu0 0
        %964 = vmatprep.mubr.bf16.mxu0 0
        %965 = vmatmul.mubr.bf16.gmra.mrb[0].mxu0 %v871
        %v966 = vpop.f32.mrb[0].mxu0
        %v967 = vadd.f32 %v883, %v966
        %v968 = vpop.f32.mrb[0].mxu0
        %v969 = vpop.f32.mrb[0].mxu0
        %v970 = vadd.f32 %v883, %v969
        %v971 = vpop.f32.mrb[0].mxu0
        %972 = vmatprep.mubr.bf16.mxu0 0
        %973 = vmatmul.mubr.bf16.gmra.mrb[0].mxu0 %v872
        %v974 = vpop.f32.mrb[0].mxu0
        %v975 = vadd.f32 %v883, %v974
        %v976 = vpop.f32.mrb[0].mxu0
        %v977 = vpop.f32.mrb[0].mxu0
        %v978 = vadd.f32 %v883, %v977
        %v979 = vpop.f32.mrb[0].mxu0
        %980 = vmatprep.mubr.bf16.mxu0 0
        %981 = vmatmul.mubr.bf16.gmra.mrb[0].mxu0 %v873
        %v982 = vpop.f32.mrb[0].mxu0
        %v983 = vadd.f32 %v883, %v982
        %v984 = vpop.f32.mrb[0].mxu0
        %v985 = vpop.f32.mrb[0].mxu0
        %v986 = vadd.f32 %v883, %v985
        %v987 = vpop.f32.mrb[0].mxu0
        %988 = vmatprep.mubr.bf16.mxu0 0
        %989 = vmatmul.mubr.bf16.gmra.mrb[0].mxu0 %v874
        %v990 = vpop.f32.mrb[0].mxu0
        %v991 = vadd.f32 %v883, %v990
        %v992 = vpop.f32.mrb[0].mxu0
        %v993 = vpop.f32.mrb[0].mxu0
        %v994 = vadd.f32 %v883, %v993
        %v995 = vpop.f32.mrb[0].mxu0
        %996 = vmatprep.mubr.bf16.mxu0 0
        %997 = vmatmul.mubr.bf16.gmra.mrb[0].mxu0 %v875
        %v998 = vpop.f32.mrb[0].mxu0
        %v999 = vadd.f32 %v883, %v998
        %v1000 = vpop.f32.mrb[0].mxu0
        %v1001 = vpop.f32.mrb[0].mxu0
        %v1002 = vadd.f32 %v883, %v1001
        %v1003 = vpop.f32.mrb[0].mxu0
        %1004 = vmatprep.mubr.bf16.mxu0 0
        %1005 = vmatmul.mubr.bf16.gmra.mrb[0].mxu0 %v876
        %v1006 = vpop.f32.mrb[0].mxu0
        %v1007 = vadd.f32 %v883, %v1006
        %v1008 = vpop.f32.mrb[0].mxu0
        %v1009 = vpop.f32.mrb[0].mxu0
        %v1010 = vadd.f32 %v883, %v1009
        %v1011 = vpop.f32.mrb[0].mxu0
        %1012 = vmatprep.mubr.bf16.mxu0 0
        %1013 = vmatmul.mubr.bf16.gmra.mrb[0].mxu0 %v877
        %v1014 = vpop.f32.mrb[0].mxu0
        %v1015 = vadd.f32 %v883, %v1014
        %v1016 = vpop.f32.mrb[0].mxu0
        %v1017 = vpop.f32.mrb[0].mxu0
        %v1018 = vadd.f32 %v883, %v1017
        %v1019 = vpop.f32.mrb[0].mxu0
        %1020 = vmatprep.mubr.bf16.mxu0 0
        %1021 = vmatmul.mubr.bf16.gmra.mrb[0].mxu0 %v878
        %v1022 = vpop.f32.mrb[0].mxu0
        %v1023 = vadd.f32 %v883, %v1022
        %v1024 = vpop.f32.mrb[0].mxu0
        %v1025 = vpop.f32.mrb[0].mxu0
        %v1026 = vadd.f32 %v883, %v1025
        %v1027 = vpop.f32.mrb[0].mxu0
        %1028 = vdwg.mxu0
        %v1029 = vld [vmem:[%s5 + $0x2] sm:$0x1]
        %vm1030 = vcmp.gt.f32.partialorder %v967, 0.0
        %vm1031 = vcmp.gt.f32.partialorder %v970, 0.0
        %vm1032 = vcmp.gt.f32.partialorder %v975, 0.0
        %vm1033 = vcmp.gt.f32.partialorder %v978, 0.0
        %vm1034 = vcmp.gt.f32.partialorder %v983, 0.0
        %vm1035 = vcmp.gt.f32.partialorder %v986, 0.0
        %vm1036 = vcmp.gt.f32.partialorder %v991, 0.0
        %vm1037 = vcmp.gt.f32.partialorder %v994, 0.0
        %vm1038 = vcmp.gt.f32.partialorder %v999, 0.0
        %vm1039 = vcmp.gt.f32.partialorder %v1002, 0.0
        %vm1040 = vcmp.gt.f32.partialorder %v1007, 0.0
        %vm1041 = vcmp.gt.f32.partialorder %v1010, 0.0
        %vm1042 = vcmp.gt.f32.partialorder %v1015, 0.0
        %vm1043 = vcmp.gt.f32.partialorder %v1018, 0.0
        %vm1044 = vcmp.gt.f32.partialorder %v1023, 0.0
        %vm1045 = vcmp.gt.f32.partialorder %v1026, 0.0
        %v1046 = vlaneseq
        %v1047 = vshrl.u32 %v1046, 7
        %v1048 = vsub.s32 0, %v1047
        %v1049 = vrot.slane %v1029, %v1048
        %v1050 = vmul.f32 %v1049, %v967
        %v1051 = vmul.f32 %v1049, %v970
        %v1052 = vmul.f32 %v1049, %v975
        %v1053 = vmul.f32 %v1049, %v978
        %v1054 = vmul.f32 %v1049, %v983
        %v1055 = vmul.f32 %v1049, %v986
        %v1056 = vmul.f32 %v1049, %v991
        %v1057 = vmul.f32 %v1049, %v994
        %v1058 = vmul.f32 %v1049, %v999
        %v1059 = vmul.f32 %v1049, %v1002
        %v1060 = vmul.f32 %v1049, %v1007
        %v1061 = vmul.f32 %v1049, %v1010
        %v1062 = vmul.f32 %v1049, %v1015
        %v1063 = vmul.f32 %v1049, %v1018
        %v1064 = vmul.f32 %v1049, %v1023
        %v1065 = vmul.f32 %v1049, %v1026
        %v1066 = vsel %vm1030, %v967, %v1050
        %v1067 = vsel %vm1031, %v970, %v1051
        %v1068 = vsel %vm1032, %v975, %v1052
        %v1069 = vsel %vm1033, %v978, %v1053
        %v1070 = vsel %vm1034, %v983, %v1054
        %v1071 = vsel %vm1035, %v986, %v1055
        %v1072 = vsel %vm1036, %v991, %v1056
        %v1073 = vsel %vm1037, %v994, %v1057
        %v1074 = vsel %vm1038, %v999, %v1058
        %v1075 = vsel %vm1039, %v1002, %v1059
        %v1076 = vsel %vm1040, %v1007, %v1060
        %v1077 = vsel %vm1041, %v1010, %v1061
        %v1078 = vsel %vm1042, %v1015, %v1062
        %v1079 = vsel %vm1043, %v1018, %v1063
        %v1080 = vsel %vm1044, %v1023, %v1064
        %v1081 = vsel %vm1045, %v1026, %v1065
        %v1082 = vld [vmem:[#allocation10] sm:$0xf]
        %v1083 = vld [vmem:[#allocation10 + $0x4] sm:$0xf]
        %v1084 = vld [vmem:[#allocation10 + $0x8] sm:$0xf]
        %v1085 = vld [vmem:[#allocation10 + $0xc] sm:$0xf]
        %v1086 = vld [vmem:[#allocation10 + $0x10] sm:$0xf]
        %v1087 = vld [vmem:[#allocation10 + $0x14] sm:$0xf]
        %v1088 = vld [vmem:[#allocation10 + $0x18] sm:$0xf]
        %v1089 = vld [vmem:[#allocation10 + $0x1c] sm:$0xf]
        %v1090 = vld [vmem:[#allocation10 + $0x20] sm:$0xf]
        %v1091 = vld [vmem:[#allocation10 + $0x24] sm:$0xf]
        %v1092 = vld [vmem:[#allocation10 + $0x28] sm:$0xf]
        %v1093 = vld [vmem:[#allocation10 + $0x2c] sm:$0xf]
        %v1094 = vld [vmem:[#allocation10 + $0x30] sm:$0xf]
        %v1095 = vld [vmem:[#allocation10 + $0x34] sm:$0xf]
        %v1096 = vld [vmem:[#allocation10 + $0x38] sm:$0xf]
        %v1097 = vld [vmem:[#allocation10 + $0x3c] sm:$0xf]
        %v1098 = vpack.c.bf16 %v1067, %v1066
        %v1099 = vpack.c.bf16 %v1069, %v1068
        %v1100 = vpack.c.bf16 %v1071, %v1070
        %v1101 = vpack.c.bf16 %v1073, %v1072
        %v1102 = vpack.c.bf16 %v1075, %v1074
        %v1103 = vpack.c.bf16 %v1077, %v1076
        %v1104 = vpack.c.bf16 %v1079, %v1078
        %v1105 = vpack.c.bf16 %v1081, %v1080
        %v1106 = vld [vmem:[%s7] sm:$0x1]
        %v1108 = vlaneseq
        %v1109 = vshrl.u32 %v1108, 7
        %v1110 = vsub.s32 0, %v1109
        %v1111 = vrot.slane %v1106, %v1110
        %v1129 = vunpack.c.l.b16 %v1082
        %v1130 = vunpack.c.l.b16 %v1083
        %v1131 = vunpack.c.l.b16 %v1084
        %v1132 = vunpack.c.l.b16 %v1085
        %v1133 = vunpack.c.l.b16 %v1086
        %v1134 = vunpack.c.l.b16 %v1087
        %v1135 = vunpack.c.l.b16 %v1088
        %v1136 = vunpack.c.l.b16 %v1089
        %v1137 = vunpack.c.l.b16 %v1090
        %v1138 = vunpack.c.l.b16 %v1091
        %v1139 = vunpack.c.l.b16 %v1092
        %v1140 = vunpack.c.l.b16 %v1093
        %v1141 = vunpack.c.l.b16 %v1094
        %v1142 = vunpack.c.l.b16 %v1095
        %v1143 = vunpack.c.l.b16 %v1096
        %v1144 = vunpack.c.l.b16 %v1097
        %v1145 = vpack.c.b16 %v1130, %v1129
        %v1146 = vpack.c.b16 %v1132, %v1131
        %v1147 = vpack.c.b16 %v1134, %v1133
        %v1148 = vpack.c.b16 %v1136, %v1135
        %v1149 = vpack.c.b16 %v1138, %v1137
        %v1150 = vpack.c.b16 %v1140, %v1139
        %v1151 = vpack.c.b16 %v1142, %v1141
        %v1152 = vpack.c.b16 %v1144, %v1143
        %1161 = vmatprep.subr.bf16.mxu0 0
        %1162 = vmatpush1.bf16.msra.mxu0 %v1145
        %1163 = vmatprep.subr.bf16.mxu0 0
        %1164 = vmatpush1.bf16.msra.mxu0 %v1146
        %1165 = vmatprep.subr.bf16.mxu0 0
        %1166 = vmatpush1.bf16.msra.mxu0 %v1147
        %1167 = vmatprep.subr.bf16.mxu0 0
        %1168 = vmatpush1.bf16.msra.mxu0 %v1148
        %1169 = vmatprep.subr.bf16.mxu0 0
        %1170 = vmatpush1.bf16.msra.mxu0 %v1149
        %1171 = vmatprep.subr.bf16.mxu0 0
        %1172 = vmatpush1.bf16.msra.mxu0 %v1150
        %1173 = vmatprep.subr.bf16.mxu0 0
        %1174 = vmatpush1.bf16.msra.mxu0 %v1151
        %1175 = vmatprep.subr.bf16.mxu0 0
        %1176 = vmatpush1.bf16.msra.mxu0 %v1152
        %1177 = vmatprep.subr.bf16.mxu0 0
        %1178 = vmatpush1.bf16.msra.mxu0 0
        %1179 = vmatprep.subr.bf16.mxu0 0
        %1180 = vmatpush1.bf16.msra.mxu0 0
        %1181 = vmatprep.subr.bf16.mxu0 0
        %1182 = vmatpush1.bf16.msra.mxu0 0
        %1183 = vmatprep.subr.bf16.mxu0 0
        %1184 = vmatpush1.bf16.msra.mxu0 0
        %1185 = vmatprep.subr.bf16.mxu0 0
        %1186 = vmatpush1.bf16.msra.mxu0 0
        %1187 = vmatprep.subr.bf16.mxu0 0
        %1188 = vmatpush1.bf16.msra.mxu0 0
        %1189 = vmatprep.subr.bf16.mxu0 0
        %1190 = vmatpush1.bf16.msra.mxu0 0
        %1191 = vmatprep.subr.bf16.mxu0 0
        %1192 = vmatpush1.bf16.msra.mxu0 0
        %1193 = vmatprep.mubr.bf16.mxu0 0
        %1194 = vmatmul.mubr.bf16.gmra.mrb[0].mxu0 %v1098
        %v1195 = vpop.f32.mrb[0].mxu0
        %v1196 = vadd.f32 %v1111, %v1195
        %v1197 = vpop.f32.mrb[0].mxu0
        %v1198 = vpop.f32.mrb[0].mxu0
        %v1199 = vadd.f32 %v1111, %v1198
        %v1200 = vpop.f32.mrb[0].mxu0
        %1201 = vmatprep.mubr.bf16.mxu0 0
        %1202 = vmatmul.mubr.bf16.gmra.mrb[0].mxu0 %v1099
        %v1203 = vpop.f32.mrb[0].mxu0
        %v1204 = vadd.f32 %v1111, %v1203
        %v1205 = vpop.f32.mrb[0].mxu0
        %v1206 = vpop.f32.mrb[0].mxu0
        %v1207 = vadd.f32 %v1111, %v1206
        %v1208 = vpop.f32.mrb[0].mxu0
        %1209 = vmatprep.mubr.bf16.mxu0 0
        %1210 = vmatmul.mubr.bf16.gmra.mrb[0].mxu0 %v1100
        %v1211 = vpop.f32.mrb[0].mxu0
        %v1212 = vadd.f32 %v1111, %v1211
        %v1213 = vpop.f32.mrb[0].mxu0
        %v1214 = vpop.f32.mrb[0].mxu0
        %v1215 = vadd.f32 %v1111, %v1214
        %v1216 = vpop.f32.mrb[0].mxu0
        %1217 = vmatprep.mubr.bf16.mxu0 0
        %1218 = vmatmul.mubr.bf16.gmra.mrb[0].mxu0 %v1101
        %v1219 = vpop.f32.mrb[0].mxu0
        %v1220 = vadd.f32 %v1111, %v1219
        %v1221 = vpop.f32.mrb[0].mxu0
        %v1222 = vpop.f32.mrb[0].mxu0
        %v1223 = vadd.f32 %v1111, %v1222
        %v1224 = vpop.f32.mrb[0].mxu0
        %1225 = vmatprep.mubr.bf16.mxu0 0
        %1226 = vmatmul.mubr.bf16.gmra.mrb[0].mxu0 %v1102
        %v1227 = vpop.f32.mrb[0].mxu0
        %v1228 = vadd.f32 %v1111, %v1227
        %v1229 = vpop.f32.mrb[0].mxu0
        %v1230 = vpop.f32.mrb[0].mxu0
        %v1231 = vadd.f32 %v1111, %v1230
        %v1232 = vpop.f32.mrb[0].mxu0
        %1233 = vmatprep.mubr.bf16.mxu0 0
        %1234 = vmatmul.mubr.bf16.gmra.mrb[0].mxu0 %v1103
        %v1235 = vpop.f32.mrb[0].mxu0
        %v1236 = vadd.f32 %v1111, %v1235
        %v1237 = vpop.f32.mrb[0].mxu0
        %v1238 = vpop.f32.mrb[0].mxu0
        %v1239 = vadd.f32 %v1111, %v1238
        %v1240 = vpop.f32.mrb[0].mxu0
        %1241 = vmatprep.mubr.bf16.mxu0 0
        %1242 = vmatmul.mubr.bf16.gmra.mrb[0].mxu0 %v1104
        %v1243 = vpop.f32.mrb[0].mxu0
        %v1244 = vadd.f32 %v1111, %v1243
        %v1245 = vpop.f32.mrb[0].mxu0
        %v1246 = vpop.f32.mrb[0].mxu0
        %v1247 = vadd.f32 %v1111, %v1246
        %v1248 = vpop.f32.mrb[0].mxu0
        %1249 = vmatprep.mubr.bf16.mxu0 0
        %1250 = vmatmul.mubr.bf16.gmra.mrb[0].mxu0 %v1105
        %v1251 = vpop.f32.mrb[0].mxu0
        %v1252 = vadd.f32 %v1111, %v1251
        %v1253 = vpop.f32.mrb[0].mxu0
        %v1254 = vpop.f32.mrb[0].mxu0
        %v1255 = vadd.f32 %v1111, %v1254
        %v1256 = vpop.f32.mrb[0].mxu0
        %1257 = vdwg.mxu0
        %1258 = vst [vmem:[%s381] sm:$0xff] %v1196
        %1259 = vst [vmem:[%s381 + $0x8] sm:$0xff] %v1199
        %1260 = vst [vmem:[%s381 + $0x10] sm:$0xff] %v1204
        %1261 = vst [vmem:[%s381 + $0x18] sm:$0xff] %v1207
        %1262 = vst [vmem:[%s381 + $0x20] sm:$0xff] %v1212
        %1263 = vst [vmem:[%s381 + $0x28] sm:$0xff] %v1215
        %1264 = vst [vmem:[%s381 + $0x30] sm:$0xff] %v1220
        %1265 = vst [vmem:[%s381 + $0x38] sm:$0xff] %v1223
        %1266 = vst [vmem:[%s381 + $0x40] sm:$0xff] %v1228
        %1267 = vst [vmem:[%s381 + $0x48] sm:$0xff] %v1231
        %1268 = vst [vmem:[%s381 + $0x50] sm:$0xff] %v1236
        %1269 = vst [vmem:[%s381 + $0x58] sm:$0xff] %v1239
        %1270 = vst [vmem:[%s381 + $0x60] sm:$0xff] %v1244
        %1271 = vst [vmem:[%s381 + $0x68] sm:$0xff] %v1247
        %1272 = vst [vmem:[%s381 + $0x70] sm:$0xff] %v1252
        %1273 = vst [vmem:[%s381 + $0x78] sm:$0xff] %v1255
        %s1274 = sand.u32 %s208, 1
        %s1275 = scalar_lea.sflag [#allocation4], %s1274
        %s1276 = sand.u32 %s208, 1
        %s1277 = smul.addr %s1276, 128
        %s1278 = scalar_lea.vmem [#allocation11], %s1277
        // Predicated region
        $region73: #{tpu_custom_call.1} parent=51 // pred_check
          %p1279 = pneg %p218
        $region74: #{tpu_custom_call.1} parent=51 // pred_check_branch
          %1281 = sbr.rel (%p1279) target = $region76
        $region75: #{tpu_custom_call.1} parent=51 // pred_region
          %s1282 = smul.u32 16, %s27
          %s1284 = ssub.s32 2048, 2048
          %1285 = vsyncadd %s1275, %s1284
          %s1286 = smul.addr %s1282, 128
          %s1287 = scalar_lea.hbm %s8, %s1286
          %s1288 = sshll.u32 %s1278, 4
          %s1289 = int_to_ptr.vmem [resolvable:$true] %s1288
          %1294 = dma.vmem_to_hbm [thread:$0]  %s1289, 2048, %s1287, %s1275, 128, 128, 8
        $region76: #{tpu_custom_call.1} parent=51 // pred_fallthru
          _
      $region52: #{tpu_custom_call.1} parent=5 // pred_fallthru
        _
      %p1295 = scmp.le.s32.totalorder 2, %s22
      // Predicated region
      $region77: #{tpu_custom_call.1} parent=5 // pred_check
        %p1296 = pneg %p1295
      $region78: #{tpu_custom_call.1} parent=5 // pred_check_branch
        %1298 = sbr.rel (%p1296) target = $region80
      $region79: #{tpu_custom_call.1} parent=5 // pred_region
        %s1299 = ssub.s32 %s22, 2
        // Predicated region
        $region81: #{tpu_custom_call.1} parent=79 // pred_check
          %p1300 = pneg %p224
        $region82: #{tpu_custom_call.1} parent=79 // pred_check_branch
          %1302 = sbr.rel (%p1300) target = $region84
        $region83: #{tpu_custom_call.1} parent=79 // pred_region
          %s1303 = sand.u32 %s209, 1
          %s1304 = scalar_lea.sflag [#allocation4], %s1303
          %s1305 = sand.u32 %s209, 1
          %s1306 = smul.addr %s1305, 128
          %s1307 = scalar_lea.vmem [#allocation11], %s1306
          %1308 = dma.done %s1304, 2048
        $region84: #{tpu_custom_call.1} parent=79 // pred_fallthru
          _
      $region80: #{tpu_custom_call.1} parent=5 // pred_fallthru
        _
    $region6: #{tpu_custom_call.1} parent=1 // loop_footer
      %s26 = sadd.s32 1, %s22
    $region7: #{tpu_custom_call.1} parent=1 // loop_footer_branch
      %21 = sbr.rel target = $region3
    $region8: #{tpu_custom_call.1} parent=1 // loop_exit
      _
    %1309 = vsyncpa [#allocation3], 1
    %s1310 = scalar_lea.sflag [#allocation3], 1
    %1311 = vsyncpa %s1310, 1
    %1312 = vsyncpa [#allocation6], 1
    %1313 = vsyncpa [#allocation9], 1
    %1314 = vsyncpa [#allocation4], 1
    %s1315 = scalar_lea.sflag [#allocation4], 1
    %1316 = vsyncpa %s1315, 1

</llo_original>
